<compile_context>
chip_gen: v6e
topology: v6e:2x2x1
jax: 0.10.0
libtpu: 0.0.40
codegen_flags: <defaults>
</compile_context>

<pallas_src>
import functools

import jax
import jax.numpy as jnp
from jax.experimental import pallas as pl
from jax.experimental.pallas import tpu as pltpu

LANES = 128  # TPU vreg lane width: K / channel / class dims are padded to this


def _round_up(v, m):
    return (v + m - 1) // m * m


def _fused_kernel(xcol_ref, wconv_ref, bconv_ref, wfc_ref, bfc_ref, out_ref,
                  *, tb, hw, cout):
    """conv3x3+bias+ReLU + 2x2 maxpool + FC for TB batch elements (one step).

    xcol_ref : [TB, 4*HW, Kp]   im2col activations (bf16, lane-dense, K padded)
    wconv_ref: [Kp, 128]        conv taps, output channels on lanes (bf16)
    bconv_ref: [1, 128]         conv bias (f32, zero-padded lanes)
    wfc_ref  : [Cout, HW, 128]  FC weights, classes on lanes (bf16)
    bfc_ref  : [1, 128]         FC bias (f32, zero-padded lanes)
    out_ref  : [1, TB, 128]     padded logits (f32, lane-dense store)
    """
    kp = xcol_ref.shape[-1]
    m = tb * 4 * hw

    # ---- conv as ONE MXU-sized matmul: [TB*4*HW, Kp] @ [Kp, 128] -----------
    lhs = xcol_ref[...].reshape(m, kp)                      # leading-dim merge
    conv = jnp.dot(lhs, wconv_ref[...],
                   preferred_element_type=jnp.float32)      # [M, 128] f32
    y = jnp.maximum(conv + bconv_ref[...], 0.0)             # bias + ReLU (f32)

    # ---- 2x2 max-pool: element-wise max tree over the 4 pool phases --------
    y4 = y.reshape(tb, 4, hw, LANES)                        # leading-dim split
    pooled = jnp.maximum(jnp.maximum(y4[:, 0], y4[:, 1]),
                         jnp.maximum(y4[:, 2], y4[:, 3]))   # [TB, HW, 128]

    # ---- FC tail: one transpose, then per-channel [TB,HW]@[HW,128] matmuls -
    pooled_t = jnp.transpose(pooled, (0, 2, 1))             # [TB, 128, HW] XLU
    acc = None
    for c in range(cout):
        part = jnp.dot(pooled_t[:, c, :].astype(wfc_ref.dtype),   # [TB, HW]
                       wfc_ref[c],                                 # [HW, 128]
                       preferred_element_type=jnp.float32)
        acc = part if acc is None else acc + part
    logits = acc + bfc_ref[...]                             # [TB, 128] f32
    out_ref[0] = logits.astype(out_ref.dtype)


def prepare_params(params, cin, h, w):
    """One-time weight relayout (hoisted out of the per-forward hot path)."""
    w_conv, b_conv = params["conv_w"], params["conv_b"]  # [Cout,Cin,3,3],[Cout]
    w_fc, b_fc = params["fc_w"], params["fc_b"]          # [Ncls, Cout*HW],[Ncls]
    cout, ncls = w_conv.shape[0], w_fc.shape[0]
    ho, wo = h // 2, w // 2
    hw = ho * wo
    k = 9 * cin
    k_pad = _round_up(k, LANES)
    assert h % 2 == 0 and w % 2 == 0, "2x2 max-pool needs even spatial dims"
    assert cout <= LANES and ncls <= LANES
    assert w_fc.shape[1] == cout * hw

    # conv taps: [Cout,Cin,3,3] -> rows ordered (ki,kj,cin) -> [Kp, 128] bf16
    wc = jnp.transpose(w_conv, (2, 3, 1, 0)).reshape(k, cout)
    wc = jnp.pad(wc, ((0, k_pad - k), (0, LANES - cout))).astype(jnp.bfloat16)
    bc = jnp.pad(b_conv, (0, LANES - cout)).reshape(1, LANES).astype(jnp.float32)

    # FC: [Ncls, Cout*HW] -> [Cout, HW, 128] (classes on lanes), bf16
    wf = jnp.transpose(w_fc.reshape(ncls, cout, hw), (1, 2, 0))
    wf = jnp.pad(wf, ((0, 0), (0, 0), (0, LANES - ncls))).astype(jnp.bfloat16)
    bf = jnp.pad(b_fc, (0, LANES - ncls)).reshape(1, LANES).astype(jnp.float32)

    meta = dict(cin=cin, h=h, w=w, cout=cout, ncls=ncls, hw=hw, k_pad=k_pad)
    return dict(wc=wc, bc=bc, wf=wf, bf=bf, meta=meta)


def calcusim_forward(x, prepped):
    """x: [N, Cin, H, W] float32 -> logits [N, num_classes]."""
    meta = prepped["meta"]
    cin, h, w = meta["cin"], meta["h"], meta["w"]
    cout, ncls, hw, k_pad = meta["cout"], meta["ncls"], meta["hw"], meta["k_pad"]
    n = x.shape[0]
    assert x.shape == (n, cin, h, w)

    # ---- per-forward activation prep: SAME-pad + im2col, lane-dense layout -
    xh = jnp.transpose(x, (0, 2, 3, 1)).astype(jnp.float32)       # NHWC
    xp = jnp.pad(xh, ((0, 0), (1, 1), (1, 1), (0, 0)))            # [N,H+2,W+2,C]
    phases = []
    for sh in range(2):
        for sw in range(2):
            taps = [xp[:, sh + ki: sh + ki + h: 2, sw + kj: sw + kj + w: 2, :]
                    for ki in range(3) for kj in range(3)]
            phases.append(jnp.concatenate(taps, axis=-1))         # [N,Ho,Wo,9C]
    xcol = jnp.stack(phases, axis=1).reshape(n, 4 * hw, 9 * cin)
    xcol = jnp.pad(xcol, ((0, 0), (0, 0), (0, k_pad - 9 * cin)))
    xcol = xcol.astype(jnp.bfloat16)                              # MXU operands

    # ---- batch blocking: <=8 per step, >=2 grid steps (v7x has 2 TCs) ------
    tb = max(1, min(8, pl.cdiv(n, 2)))
    g = pl.cdiv(n, tb)
    n_pad = g * tb
    if n_pad != n:
        xcol = jnp.pad(xcol, ((0, n_pad - n), (0, 0), (0, 0)))

    kernel = functools.partial(_fused_kernel, tb=tb, hw=hw, cout=cout)
    flops = 2 * n_pad * (4 * hw * k_pad * LANES + cout * hw * LANES)
    bytes_accessed = (2 * (xcol.size + prepped["wc"].size + prepped["wf"].size)
                      + 4 * (prepped["bc"].size + prepped["bf"].size)
                      + 4 * n_pad * LANES)

    out = pl.pallas_call(
        kernel,
        out_shape=jax.ShapeDtypeStruct((g, tb, LANES), jnp.float32),
        grid=(g,),
        in_specs=[
            pl.BlockSpec((tb, 4 * hw, k_pad), lambda i: (i, 0, 0)),
            pl.BlockSpec((k_pad, LANES), lambda i: (0, 0)),       # resident
            pl.BlockSpec((1, LANES), lambda i: (0, 0)),           # resident
            pl.BlockSpec((cout * 1, hw, LANES)[0:0] or (cout, hw, LANES),
                         lambda i: (0, 0, 0)),                    # resident
            pl.BlockSpec((1, LANES), lambda i: (0, 0)),           # resident
        ],
        out_specs=pl.BlockSpec((1, tb, LANES), lambda i: (i, 0, 0)),
        compiler_params=pltpu.CompilerParams(
            dimension_semantics=("parallel",)),
        cost_estimate=pl.CostEstimate(flops=flops, transcendentals=0,
                                      bytes_accessed=bytes_accessed),
    )(xcol, prepped["wc"], prepped["bc"], prepped["wf"], prepped["bf"])

    return out.reshape(n_pad, LANES)[:n, :ncls]

# TODO(synk): CTG/HostGraph tile partitioning, per-tile res_dict observation,
# quantize/observe/physical/stats modes and save_results()/report_results()
# have no Pallas equivalent; a single fused device+host task is used instead.


# ----------------------------------------------------------------------------
# Reference (plain JAX, f32) for correctness check
# ----------------------------------------------------------------------------
def reference_forward(x, params):
    w_conv, b_conv = params["conv_w"], params["conv_b"]
    w_fc, b_fc = params["fc_w"], params["fc_b"]
    y = jax.lax.conv_general_dilated(
        x, w_conv, window_strides=(1, 1), padding="SAME",
        dimension_numbers=("NCHW", "OIHW", "NCHW"))
    y = jnp.maximum(y + b_conv[None, :, None, None], 0.0)
    n, c, hh, ww = y.shape
    y = y.reshape(n, c, hh // 2, 2, ww // 2, 2).max(axis=(3, 5))
    flat = y.reshape(n, -1)
    return flat @ w_fc.T + b_fc[None, :]


if __name__ == "__main__":
    key = jax.random.PRNGKey(0)
    k_x, k_cw, k_cb, k_fw, k_fb = jax.random.split(key, 5)

    N, Cin, H, W = 2, 4, 16, 16
    Cout, num_classes = 8, 10
    feat = Cout * (H // 2) * (W // 2)                     # 8 * 8 * 8 = 512

    x = jax.random.normal(k_x, (N, Cin, H, W), dtype=jnp.float32)
    params = {
        "conv_w": 0.1 * jax.random.normal(k_cw, (Cout, Cin, 3, 3), jnp.float32),
        "conv_b": 0.1 * jax.random.normal(k_cb, (Cout,), jnp.float32),
        "fc_w": 0.05 * jax.random.normal(k_fw, (num_classes, feat), jnp.float32),
        "fc_b": 0.05 * jax.random.normal(k_fb, (num_classes,), jnp.float32),
    }

    prepped = prepare_params(params, Cin, H, W)           # one-time relayout
    out = jax.block_until_ready(calcusim_forward(x, prepped))
    ref = jax.block_until_ready(reference_forward(x, params))
    assert out.shape == (N, num_classes), out.shape
    # bf16 MXU operands with f32 accumulation -> slightly looser tolerance
    assert jnp.allclose(out, ref, atol=5e-2, rtol=5e-2), "mismatch vs reference"
    print("KERNEL_OK")
</pallas_src>

<mosaic_0001>
module attributes {stable_mosaic.version = 11 : i64} {
  func.func @_fused_kernel(%arg0: i32, %arg1: memref<1x256x128xbf16, #tpu.memory_space<vmem>>, %arg2: memref<128x128xbf16, #tpu.memory_space<vmem>>, %arg3: memref<1x128xf32, #tpu.memory_space<vmem>>, %arg4: memref<8x64x128xbf16, #tpu.memory_space<vmem>>, %arg5: memref<1x128xf32, #tpu.memory_space<vmem>>, %arg6: memref<1x1x128xf32, #tpu.memory_space<vmem>>) attributes {dimension_semantics = [#tpu.dimension_semantics<parallel>], iteration_bounds = array<i64: 2>, scalar_prefetch = 0 : i64, scratch_operands = 0 : i64, tpu.core_type = #tpu.core_type<tc>, window_params = [{transform_indices = @transform_0, window_bounds = array<i64: 1, 256, 128>}, {pipeline_mode = #tpu.pipeline_mode<synchronous>, transform_indices = @transform_1, window_bounds = array<i64: 128, 128>}, {pipeline_mode = #tpu.pipeline_mode<synchronous>, transform_indices = @transform_2, window_bounds = array<i64: 1, 128>}, {pipeline_mode = #tpu.pipeline_mode<synchronous>, transform_indices = @transform_3, window_bounds = array<i64: 8, 64, 128>}, {pipeline_mode = #tpu.pipeline_mode<synchronous>, transform_indices = @transform_4, window_bounds = array<i64: 1, 128>}, {transform_indices = @transform_5, window_bounds = array<i64: 1, 1, 128>}]} {
    %c0 = arith.constant 0 : index
    %c0_0 = arith.constant 0 : index
    %c0_1 = arith.constant 0 : index
    %0 = vector.load %arg1[%c0, %c0_0, %c0_1] : memref<1x256x128xbf16, #tpu.memory_space<vmem>>, vector<1x256x128xbf16>
    %1 = vector.shape_cast %0 : vector<1x256x128xbf16> to vector<256x128xbf16>
    %c0_2 = arith.constant 0 : index
    %c0_3 = arith.constant 0 : index
    %2 = vector.load %arg2[%c0_2, %c0_3] : memref<128x128xbf16, #tpu.memory_space<vmem>>, vector<128x128xbf16>
    %cst = arith.constant dense<0.000000e+00> : vector<256x128xf32>
    %3 = tpu.matmul %1, %2, %cst {dimension_numbers = #tpu.dot_dimension_numbers<[1], [0], [0], [1], [0, 0, 1, 1], [], []>} : vector<256x128xbf16>, vector<128x128xbf16>, vector<256x128xf32> -> vector<256x128xf32>
    %c0_4 = arith.constant 0 : index
    %c0_5 = arith.constant 0 : index
    %4 = vector.load %arg3[%c0_4, %c0_5] : memref<1x128xf32, #tpu.memory_space<vmem>>, vector<1x128xf32>
    %5 = vector.broadcast %4 : vector<1x128xf32> to vector<256x128xf32>
    %6 = arith.addf %3, %5 : vector<256x128xf32>
    %cst_6 = arith.constant 0.000000e+00 : f32
    %7 = vector.broadcast %cst_6 : f32 to vector<256x128xf32>
    %8 = arith.maximumf %6, %7 : vector<256x128xf32>
    %9 = vector.shape_cast %8 : vector<256x128xf32> to vector<1x4x64x128xf32>
    %10 = vector.extract_strided_slice %9 {offsets = [0, 0, 0, 0], sizes = [1, 1, 64, 128], strides = [1, 1, 1, 1]} : vector<1x4x64x128xf32> to vector<1x1x64x128xf32>
    %11 = vector.shape_cast %10 : vector<1x1x64x128xf32> to vector<1x64x128xf32>
    %12 = vector.extract_strided_slice %9 {offsets = [0, 1, 0, 0], sizes = [1, 1, 64, 128], strides = [1, 1, 1, 1]} : vector<1x4x64x128xf32> to vector<1x1x64x128xf32>
    %13 = vector.shape_cast %12 : vector<1x1x64x128xf32> to vector<1x64x128xf32>
    %14 = arith.maximumf %11, %13 : vector<1x64x128xf32>
    %15 = vector.extract_strided_slice %9 {offsets = [0, 2, 0, 0], sizes = [1, 1, 64, 128], strides = [1, 1, 1, 1]} : vector<1x4x64x128xf32> to vector<1x1x64x128xf32>
    %16 = vector.shape_cast %15 : vector<1x1x64x128xf32> to vector<1x64x128xf32>
    %17 = vector.extract_strided_slice %9 {offsets = [0, 3, 0, 0], sizes = [1, 1, 64, 128], strides = [1, 1, 1, 1]} : vector<1x4x64x128xf32> to vector<1x1x64x128xf32>
    %18 = vector.shape_cast %17 : vector<1x1x64x128xf32> to vector<1x64x128xf32>
    %19 = arith.maximumf %16, %18 : vector<1x64x128xf32>
    %20 = arith.maximumf %14, %19 : vector<1x64x128xf32>
    %21 = tpu.transpose %20, [0, 2, 1] : vector<1x64x128xf32> -> vector<1x128x64xf32>
    %22 = vector.extract_strided_slice %21 {offsets = [0, 0, 0], sizes = [1, 1, 64], strides = [1, 1, 1]} : vector<1x128x64xf32> to vector<1x1x64xf32>
    %23 = vector.shape_cast %22 : vector<1x1x64xf32> to vector<1x64xf32>
    %24 = arith.truncf %23 : vector<1x64xf32> to vector<1x64xbf16>
    %c0_7 = arith.constant 0 : index
    %c0_8 = arith.constant 0 : index
    %c0_9 = arith.constant 0 : index
    %25 = vector.load %arg4[%c0_7, %c0_8, %c0_9] : memref<8x64x128xbf16, #tpu.memory_space<vmem>>, vector<1x64x128xbf16>
    %26 = vector.shape_cast %25 : vector<1x64x128xbf16> to vector<64x128xbf16>
    %cst_10 = arith.constant dense<0.000000e+00> : vector<1x128xf32>
    %27 = tpu.matmul %24, %26, %cst_10 {dimension_numbers = #tpu.dot_dimension_numbers<[1], [0], [0], [1], [0, 0, 1, 1], [], []>} : vector<1x64xbf16>, vector<64x128xbf16>, vector<1x128xf32> -> vector<1x128xf32>
    %28 = vector.extract_strided_slice %21 {offsets = [0, 1, 0], sizes = [1, 1, 64], strides = [1, 1, 1]} : vector<1x128x64xf32> to vector<1x1x64xf32>
    %29 = vector.shape_cast %28 : vector<1x1x64xf32> to vector<1x64xf32>
    %30 = arith.truncf %29 : vector<1x64xf32> to vector<1x64xbf16>
    %c1 = arith.constant 1 : index
    %c0_11 = arith.constant 0 : index
    %c0_12 = arith.constant 0 : index
    %31 = vector.load %arg4[%c1, %c0_11, %c0_12] : memref<8x64x128xbf16, #tpu.memory_space<vmem>>, vector<1x64x128xbf16>
    %32 = vector.shape_cast %31 : vector<1x64x128xbf16> to vector<64x128xbf16>
    %cst_13 = arith.constant dense<0.000000e+00> : vector<1x128xf32>
    %33 = tpu.matmul %30, %32, %cst_13 {dimension_numbers = #tpu.dot_dimension_numbers<[1], [0], [0], [1], [0, 0, 1, 1], [], []>} : vector<1x64xbf16>, vector<64x128xbf16>, vector<1x128xf32> -> vector<1x128xf32>
    %34 = arith.addf %27, %33 : vector<1x128xf32>
    %35 = vector.extract_strided_slice %21 {offsets = [0, 2, 0], sizes = [1, 1, 64], strides = [1, 1, 1]} : vector<1x128x64xf32> to vector<1x1x64xf32>
    %36 = vector.shape_cast %35 : vector<1x1x64xf32> to vector<1x64xf32>
    %37 = arith.truncf %36 : vector<1x64xf32> to vector<1x64xbf16>
    %c2 = arith.constant 2 : index
    %c0_14 = arith.constant 0 : index
    %c0_15 = arith.constant 0 : index
    %38 = vector.load %arg4[%c2, %c0_14, %c0_15] : memref<8x64x128xbf16, #tpu.memory_space<vmem>>, vector<1x64x128xbf16>
    %39 = vector.shape_cast %38 : vector<1x64x128xbf16> to vector<64x128xbf16>
    %cst_16 = arith.constant dense<0.000000e+00> : vector<1x128xf32>
    %40 = tpu.matmul %37, %39, %cst_16 {dimension_numbers = #tpu.dot_dimension_numbers<[1], [0], [0], [1], [0, 0, 1, 1], [], []>} : vector<1x64xbf16>, vector<64x128xbf16>, vector<1x128xf32> -> vector<1x128xf32>
    %41 = arith.addf %34, %40 : vector<1x128xf32>
    %42 = vector.extract_strided_slice %21 {offsets = [0, 3, 0], sizes = [1, 1, 64], strides = [1, 1, 1]} : vector<1x128x64xf32> to vector<1x1x64xf32>
    %43 = vector.shape_cast %42 : vector<1x1x64xf32> to vector<1x64xf32>
    %44 = arith.truncf %43 : vector<1x64xf32> to vector<1x64xbf16>
    %c3 = arith.constant 3 : index
    %c0_17 = arith.constant 0 : index
    %c0_18 = arith.constant 0 : index
    %45 = vector.load %arg4[%c3, %c0_17, %c0_18] : memref<8x64x128xbf16, #tpu.memory_space<vmem>>, vector<1x64x128xbf16>
    %46 = vector.shape_cast %45 : vector<1x64x128xbf16> to vector<64x128xbf16>
    %cst_19 = arith.constant dense<0.000000e+00> : vector<1x128xf32>
    %47 = tpu.matmul %44, %46, %cst_19 {dimension_numbers = #tpu.dot_dimension_numbers<[1], [0], [0], [1], [0, 0, 1, 1], [], []>} : vector<1x64xbf16>, vector<64x128xbf16>, vector<1x128xf32> -> vector<1x128xf32>
    %48 = arith.addf %41, %47 : vector<1x128xf32>
    %49 = vector.extract_strided_slice %21 {offsets = [0, 4, 0], sizes = [1, 1, 64], strides = [1, 1, 1]} : vector<1x128x64xf32> to vector<1x1x64xf32>
    %50 = vector.shape_cast %49 : vector<1x1x64xf32> to vector<1x64xf32>
    %51 = arith.truncf %50 : vector<1x64xf32> to vector<1x64xbf16>
    %c4 = arith.constant 4 : index
    %c0_20 = arith.constant 0 : index
    %c0_21 = arith.constant 0 : index
    %52 = vector.load %arg4[%c4, %c0_20, %c0_21] : memref<8x64x128xbf16, #tpu.memory_space<vmem>>, vector<1x64x128xbf16>
    %53 = vector.shape_cast %52 : vector<1x64x128xbf16> to vector<64x128xbf16>
    %cst_22 = arith.constant dense<0.000000e+00> : vector<1x128xf32>
    %54 = tpu.matmul %51, %53, %cst_22 {dimension_numbers = #tpu.dot_dimension_numbers<[1], [0], [0], [1], [0, 0, 1, 1], [], []>} : vector<1x64xbf16>, vector<64x128xbf16>, vector<1x128xf32> -> vector<1x128xf32>
    %55 = arith.addf %48, %54 : vector<1x128xf32>
    %56 = vector.extract_strided_slice %21 {offsets = [0, 5, 0], sizes = [1, 1, 64], strides = [1, 1, 1]} : vector<1x128x64xf32> to vector<1x1x64xf32>
    %57 = vector.shape_cast %56 : vector<1x1x64xf32> to vector<1x64xf32>
    %58 = arith.truncf %57 : vector<1x64xf32> to vector<1x64xbf16>
    %c5 = arith.constant 5 : index
    %c0_23 = arith.constant 0 : index
    %c0_24 = arith.constant 0 : index
    %59 = vector.load %arg4[%c5, %c0_23, %c0_24] : memref<8x64x128xbf16, #tpu.memory_space<vmem>>, vector<1x64x128xbf16>
    %60 = vector.shape_cast %59 : vector<1x64x128xbf16> to vector<64x128xbf16>
    %cst_25 = arith.constant dense<0.000000e+00> : vector<1x128xf32>
    %61 = tpu.matmul %58, %60, %cst_25 {dimension_numbers = #tpu.dot_dimension_numbers<[1], [0], [0], [1], [0, 0, 1, 1], [], []>} : vector<1x64xbf16>, vector<64x128xbf16>, vector<1x128xf32> -> vector<1x128xf32>
    %62 = arith.addf %55, %61 : vector<1x128xf32>
    %63 = vector.extract_strided_slice %21 {offsets = [0, 6, 0], sizes = [1, 1, 64], strides = [1, 1, 1]} : vector<1x128x64xf32> to vector<1x1x64xf32>
    %64 = vector.shape_cast %63 : vector<1x1x64xf32> to vector<1x64xf32>
    %65 = arith.truncf %64 : vector<1x64xf32> to vector<1x64xbf16>
    %c6 = arith.constant 6 : index
    %c0_26 = arith.constant 0 : index
    %c0_27 = arith.constant 0 : index
    %66 = vector.load %arg4[%c6, %c0_26, %c0_27] : memref<8x64x128xbf16, #tpu.memory_space<vmem>>, vector<1x64x128xbf16>
    %67 = vector.shape_cast %66 : vector<1x64x128xbf16> to vector<64x128xbf16>
    %cst_28 = arith.constant dense<0.000000e+00> : vector<1x128xf32>
    %68 = tpu.matmul %65, %67, %cst_28 {dimension_numbers = #tpu.dot_dimension_numbers<[1], [0], [0], [1], [0, 0, 1, 1], [], []>} : vector<1x64xbf16>, vector<64x128xbf16>, vector<1x128xf32> -> vector<1x128xf32>
    %69 = arith.addf %62, %68 : vector<1x128xf32>
    %70 = vector.extract_strided_slice %21 {offsets = [0, 7, 0], sizes = [1, 1, 64], strides = [1, 1, 1]} : vector<1x128x64xf32> to vector<1x1x64xf32>
    %71 = vector.shape_cast %70 : vector<1x1x64xf32> to vector<1x64xf32>
    %72 = arith.truncf %71 : vector<1x64xf32> to vector<1x64xbf16>
    %c7 = arith.constant 7 : index
    %c0_29 = arith.constant 0 : index
    %c0_30 = arith.constant 0 : index
    %73 = vector.load %arg4[%c7, %c0_29, %c0_30] : memref<8x64x128xbf16, #tpu.memory_space<vmem>>, vector<1x64x128xbf16>
    %74 = vector.shape_cast %73 : vector<1x64x128xbf16> to vector<64x128xbf16>
    %cst_31 = arith.constant dense<0.000000e+00> : vector<1x128xf32>
    %75 = tpu.matmul %72, %74, %cst_31 {dimension_numbers = #tpu.dot_dimension_numbers<[1], [0], [0], [1], [0, 0, 1, 1], [], []>} : vector<1x64xbf16>, vector<64x128xbf16>, vector<1x128xf32> -> vector<1x128xf32>
    %76 = arith.addf %69, %75 : vector<1x128xf32>
    %c0_32 = arith.constant 0 : index
    %c0_33 = arith.constant 0 : index
    %77 = vector.load %arg5[%c0_32, %c0_33] : memref<1x128xf32, #tpu.memory_space<vmem>>, vector<1x128xf32>
    %78 = arith.addf %76, %77 : vector<1x128xf32>
    %c0_34 = arith.constant 0 : index
    %c0_35 = arith.constant 0 : index
    %c0_36 = arith.constant 0 : index
    %79 = vector.load %arg6[%c0_34, %c0_35, %c0_36] : memref<1x1x128xf32, #tpu.memory_space<vmem>>, vector<1x1x128xf32>
    %80 = vector.shape_cast %79 : vector<1x1x128xf32> to vector<1x128xf32>
    %81 = vector.shape_cast %78 : vector<1x128xf32> to vector<1x1x128xf32>
    tpu.vector_store %arg6[%c0_34, %c0_35, %c0_36], %81 {strides = array<i32>} : memref<1x1x128xf32, #tpu.memory_space<vmem>>, vector<1x1x128xf32>,
    return
  }
  func.func @transform_0(%arg0: i32) -> (i32, i32, i32) {
    %c0_i32 = arith.constant 0 : i32
    %c0_i32_0 = arith.constant 0 : i32
    %c0_i32_1 = arith.constant 0 : i32
    return %arg0, %c0_i32, %c0_i32_0 : i32, i32, i32
  }
  func.func @transform_1(%arg0: i32) -> (i32, i32) {
    %c0_i32 = arith.constant 0 : i32
    %c0_i32_0 = arith.constant 0 : i32
    %c0_i32_1 = arith.constant 0 : i32
    return %c0_i32, %c0_i32_0 : i32, i32
  }
  func.func @transform_2(%arg0: i32) -> (i32, i32) {
    %c0_i32 = arith.constant 0 : i32
    %c0_i32_0 = arith.constant 0 : i32
    %c0_i32_1 = arith.constant 0 : i32
    return %c0_i32, %c0_i32_0 : i32, i32
  }
  func.func @transform_3(%arg0: i32) -> (i32, i32, i32) {
    %c0_i32 = arith.constant 0 : i32
    %c0_i32_0 = arith.constant 0 : i32
    %c0_i32_1 = arith.constant 0 : i32
    %c0_i32_2 = arith.constant 0 : i32
    return %c0_i32, %c0_i32_0, %c0_i32_1 : i32, i32, i32
  }
  func.func @transform_4(%arg0: i32) -> (i32, i32) {
    %c0_i32 = arith.constant 0 : i32
    %c0_i32_0 = arith.constant 0 : i32
    %c0_i32_1 = arith.constant 0 : i32
    return %c0_i32, %c0_i32_0 : i32, i32
  }
  func.func @transform_5(%arg0: i32) -> (i32, i32, i32) {
    %c0_i32 = arith.constant 0 : i32
    %c0_i32_0 = arith.constant 0 : i32
    %c0_i32_1 = arith.constant 0 : i32
    return %arg0, %c0_i32, %c0_i32_0 : i32, i32, i32
  }
}

</mosaic_0001>

<llo_original>
// kernel: tpu_custom_call.1
$region0: #{tpu_custom_call.1}
  #allocation0 [shape = 'u32[]', space=smem, size = 0x4, offset = 0x4, fixed_abs, tag = 'smem constant byte address 0x4 - core index']
  #allocation1 [shape = 'u32[144,128]{1,0:T(1,128)}', space=vmem, size = 0x12000, scoped, tag = 'internal scratch']
  %s0 = inlined_call_operand.hbm [shape: bf16[2,256,128], index: 0, kind: input, shape index: {}]
  %s1 = inlined_call_operand.hbm [shape: bf16[128,128], index: 1, kind: input, shape index: {}]
  %s2 = inlined_call_operand.vmem [shape: f32[1,128], index: 2, kind: input, shape index: {}]
  %s3 = inlined_call_operand.hbm [shape: bf16[8,64,128], index: 3, kind: input, shape index: {}]
  %s4 = inlined_call_operand.vmem [shape: f32[1,128], index: 4, kind: input, shape index: {}]
  %s5 = inlined_call_operand.hbm [shape: f32[2,1,128], index: 5, kind: output, shape index: {}]
  %s6 = sld [smem:[#allocation0]]
  $region65: #{tpu_custom_call.1} parent=0
    _
  %s8 = ssub.s32 1, %s6
  %s9 = scalar_select 0, %s8, %s6
  $region1: #{tpu_custom_call.1} parent=0
    #allocation2 [shape = 'u8[131072]{0}', space=vmem, size = 0x20000, scoped, tag = 'input window, operand 0']
    #allocation3 [shape = 's32[2]{0}', space=sflag, size = 0x8, scoped, tag = 'scoped memory for tpu_custom_call.1']
    #allocation4 [shape = 's32[2]{0}', space=sflag, size = 0x8, scoped, tag = 'scoped memory for tpu_custom_call.1']
    #allocation5 [shape = 'u8[32768]{0}', space=vmem, size = 0x8000, scoped, tag = 'input window, operand 1, single buffered']
    #allocation6 [shape = 's32[1]{0}', space=sflag, size = 0x4, scoped, tag = 'scoped memory for tpu_custom_call.1']
    #allocation7 [shape = 'u8[131072]{0}', space=vmem, size = 0x20000, scoped, tag = 'input window, operand 3, single buffered']
    #allocation8 [shape = 'u8[1024]{0}', space=vmem, size = 0x400, scoped, tag = 'output window, operand 0']
    %10 = vsyncpa [#allocation3], 0
    %s11 = scalar_lea.sflag [#allocation3], 1
    %12 = vsyncpa %s11, 0
    %13 = vsyncpa [#allocation6], 0
    %14 = vsyncpa [#allocation4], 0
    %s15 = scalar_lea.sflag [#allocation4], 1
    %16 = vsyncpa %s15, 0
    loop: start=0, step=1, limit=4
    $region2: #{tpu_custom_call.1} parent=1 // loop_pre_header
      _
    $region3: #{tpu_custom_call.1} parent=1 // loop_header
      %s18 = sphi 0, %s22
      %p19 = scmp.ge.s32.totalorder %s18, 4
      %s28 = sphi 0, %s30
      %s31 = sphi 0, %s28
      %s32 = sphi 0, %s31
      %s48 = sphi 0, %s32
      %s52 = sphi 0, %s52
      %s54 = sphi 0, %s52
      %s55 = sphi 0, %s54
      %s69 = sphi 0, %s55
      %s73 = sphi 0, %s73
      %s75 = sphi 0, %s73
      %s76 = sphi 0, %s75
      %s90 = sphi 0, %s76
      %s94 = sphi 0, %s94
      %s96 = sphi 0, %s94
      %s97 = sphi 0, %s96
      %s111 = sphi 0, %s97
      %s115 = sphi 0, %s115
      %s117 = sphi 0, %s115
      %s118 = sphi 0, %s117
      %s132 = sphi 0, %s118
      %s138 = sphi 0, %s140
      %s141 = sphi 0, %s138
      %s142 = sphi 0, %s141
      %s158 = sphi 0, %s142
    $region4: #{tpu_custom_call.1} parent=1 // loop_header_branch
      %21 = sbr.rel (%p19) target = $region8
    $region5: #{tpu_custom_call.1} parent=1 // loop_body
      %s23 = ssub.s32 %s18, 1
      %s24 = ssub.s32 %s18, 2
      %s25 = sadd.s32 %s18, 1
      %s26 = ssub.s32 %s18, %s25
      %p27 = scmp.eq.s32.totalorder %s26, 0
      %s29 = sadd.s32 %s28, 1
      %s30 = scalar_select %p27, %s28, %s29
      %p33 = pneg %p27
      %p34 = scmp.eq.s32.totalorder %s18, 1
      %p35 = por %p33, %p34
      %p36 = scmp.ne.s32.totalorder %s28, %s31
      %p37 = scmp.eq.s32.totalorder %s18, 0
      %p38 = por %p36, %p37
      %p39 = scmp.ne.s32.totalorder %s28, %s31
      %p40 = scmp.eq.s32.totalorder %s23, 1
      %p41 = por %p39, %p40
      %p42 = scmp.ne.s32.totalorder %s31, %s32
      %p43 = scmp.eq.s32.totalorder %s23, 0
      %p44 = por %p42, %p43
      %p45 = scmp.ne.s32.totalorder %s31, %s32
      %p46 = scmp.eq.s32.totalorder %s24, 1
      %p47 = por %p45, %p46
      %p49 = scmp.ne.s32.totalorder %s32, %s48
      %p50 = scmp.eq.s32.totalorder %s24, 0
      %p51 = por %p49, %p50
      %s53 = sadd.s32 %s52, 1
      %p56 = scmp.eq.s32.totalorder %s18, 1
      %p57 = scmp.ne.s32.totalorder %s52, %s54
      %p58 = scmp.eq.s32.totalorder %s18, 0
      %p59 = por %p57, %p58
      %p60 = scmp.ne.s32.totalorder %s52, %s54
      %p61 = scmp.eq.s32.totalorder %s23, 1
      %p62 = por %p60, %p61
      %p63 = scmp.ne.s32.totalorder %s54, %s55
      %p64 = scmp.eq.s32.totalorder %s23, 0
      %p65 = por %p63, %p64
      %p66 = scmp.ne.s32.totalorder %s54, %s55
      %p67 = scmp.eq.s32.totalorder %s24, 1
      %p68 = por %p66, %p67
      %p70 = scmp.ne.s32.totalorder %s55, %s69
      %p71 = scmp.eq.s32.totalorder %s24, 0
      %p72 = por %p70, %p71
      %s74 = sadd.s32 %s73, 1
      %p77 = scmp.eq.s32.totalorder %s18, 1
      %p78 = scmp.ne.s32.totalorder %s73, %s75
      %p79 = scmp.eq.s32.totalorder %s18, 0
      %p80 = por %p78, %p79
      %p81 = scmp.ne.s32.totalorder %s73, %s75
      %p82 = scmp.eq.s32.totalorder %s23, 1
      %p83 = por %p81, %p82
      %p84 = scmp.ne.s32.totalorder %s75, %s76
      %p85 = scmp.eq.s32.totalorder %s23, 0
      %p86 = por %p84, %p85
      %p87 = scmp.ne.s32.totalorder %s75, %s76
      %p88 = scmp.eq.s32.totalorder %s24, 1
      %p89 = por %p87, %p88
      %p91 = scmp.ne.s32.totalorder %s76, %s90
      %p92 = scmp.eq.s32.totalorder %s24, 0
      %p93 = por %p91, %p92
      %s95 = sadd.s32 %s94, 1
      %p98 = scmp.eq.s32.totalorder %s18, 1
      %p99 = scmp.ne.s32.totalorder %s94, %s96
      %p100 = scmp.eq.s32.totalorder %s18, 0
      %p101 = por %p99, %p100
      %p102 = scmp.ne.s32.totalorder %s94, %s96
      %p103 = scmp.eq.s32.totalorder %s23, 1
      %p104 = por %p102, %p103
      %p105 = scmp.ne.s32.totalorder %s96, %s97
      %p106 = scmp.eq.s32.totalorder %s23, 0
      %p107 = por %p105, %p106
      %p108 = scmp.ne.s32.totalorder %s96, %s97
      %p109 = scmp.eq.s32.totalorder %s24, 1
      %p110 = por %p108, %p109
      %p112 = scmp.ne.s32.totalorder %s97, %s111
      %p113 = scmp.eq.s32.totalorder %s24, 0
      %p114 = por %p112, %p113
      %s116 = sadd.s32 %s115, 1
      %p119 = scmp.eq.s32.totalorder %s18, 1
      %p120 = scmp.ne.s32.totalorder %s115, %s117
      %p121 = scmp.eq.s32.totalorder %s18, 0
      %p122 = por %p120, %p121
      %p123 = scmp.ne.s32.totalorder %s115, %s117
      %p124 = scmp.eq.s32.totalorder %s23, 1
      %p125 = por %p123, %p124
      %p126 = scmp.ne.s32.totalorder %s117, %s118
      %p127 = scmp.eq.s32.totalorder %s23, 0
      %p128 = por %p126, %p127
      %p129 = scmp.ne.s32.totalorder %s117, %s118
      %p130 = scmp.eq.s32.totalorder %s24, 1
      %p131 = por %p129, %p130
      %p133 = scmp.ne.s32.totalorder %s118, %s132
      %p134 = scmp.eq.s32.totalorder %s24, 0
      %p135 = por %p133, %p134
      %s136 = ssub.s32 %s18, %s25
      %p137 = scmp.eq.s32.totalorder %s136, 0
      %s139 = sadd.s32 %s138, 1
      %s140 = scalar_select %p137, %s138, %s139
      %p143 = pneg %p137
      %p144 = scmp.eq.s32.totalorder %s18, 1
      %p145 = por %p143, %p144
      %p146 = scmp.ne.s32.totalorder %s138, %s141
      %p147 = scmp.eq.s32.totalorder %s18, 0
      %p148 = por %p146, %p147
      %p149 = scmp.ne.s32.totalorder %s138, %s141
      %p150 = scmp.eq.s32.totalorder %s23, 1
      %p151 = por %p149, %p150
      %p152 = scmp.ne.s32.totalorder %s141, %s142
      %p153 = scmp.eq.s32.totalorder %s23, 0
      %p154 = por %p152, %p153
      %p155 = scmp.ne.s32.totalorder %s141, %s142
      %p156 = scmp.eq.s32.totalorder %s24, 1
      %p157 = por %p155, %p156
      %p159 = scmp.ne.s32.totalorder %s142, %s158
      %p160 = scmp.eq.s32.totalorder %s24, 0
      %p161 = por %p159, %p160
      %p162 = scmp.le.s32.totalorder 1, %s18
      %p163 = scmp.lt.s32.totalorder %s18, 3
      %p164 = pnand %p162, %p163
      %p165 = pneg %p164
      // Predicated region
      $region9: #{tpu_custom_call.1} parent=5 // pred_check
        _
      $region10: #{tpu_custom_call.1} parent=5 // pred_check_branch
        %167 = sbr.rel (%p164) target = $region12
      $region11: #{tpu_custom_call.1} parent=5 // pred_region
        %s168 = ssub.s32 %s18, 1
        // Predicated region
        $region13: #{tpu_custom_call.1} parent=11 // pred_check
          %p169 = pneg %p65
        $region14: #{tpu_custom_call.1} parent=11 // pred_check_branch
          %171 = sbr.rel (%p169) target = $region16
        $region15: #{tpu_custom_call.1} parent=11 // pred_region
          %s173 = ssub.s32 1024, 1024
          %174 = vsyncadd [#allocation6], %s173
          %s175 = sshll.u32 [#allocation5], 4
          %s176 = int_to_ptr.vmem [resolvable:$true] %s175
          %181 = dma.hbm_to_vmem [thread:$0]  %s1, 1024, %s176, [#allocation6], 64, 64, 4
        $region16: #{tpu_custom_call.1} parent=11 // pred_fallthru
          _
        // Predicated region
        $region17: #{tpu_custom_call.1} parent=11 // pred_check
          %p182 = pneg %p86
        $region18: #{tpu_custom_call.1} parent=11 // pred_check_branch
          %184 = sbr.rel (%p182) target = $region20
        $region19: #{tpu_custom_call.1} parent=11 // pred_region
          _
        $region20: #{tpu_custom_call.1} parent=11 // pred_fallthru
          _
        // Predicated region
        $region21: #{tpu_custom_call.1} parent=11 // pred_check
          %p185 = pneg %p107
        $region22: #{tpu_custom_call.1} parent=11 // pred_check_branch
          %187 = sbr.rel (%p185) target = $region24
        $region23: #{tpu_custom_call.1} parent=11 // pred_region
          %s189 = ssub.s32 4096, 4096
          %190 = vsyncadd [#allocation6], %s189
          %s191 = sshll.u32 [#allocation7], 4
          %s192 = int_to_ptr.vmem [resolvable:$true] %s191
          %197 = dma.hbm_to_vmem [thread:$0]  %s3, 4096, %s192, [#allocation6], 64, 64, 4
        $region24: #{tpu_custom_call.1} parent=11 // pred_fallthru
          _
        // Predicated region
        $region25: #{tpu_custom_call.1} parent=11 // pred_check
          %p198 = pneg %p128
        $region26: #{tpu_custom_call.1} parent=11 // pred_check_branch
          %200 = sbr.rel (%p198) target = $region28
        $region27: #{tpu_custom_call.1} parent=11 // pred_region
          _
        $region28: #{tpu_custom_call.1} parent=11 // pred_fallthru
          _
      $region12: #{tpu_custom_call.1} parent=5 // pred_fallthru
        _
      %p201 = scmp.lt.s32.totalorder %s18, 2
      // Predicated region
      $region29: #{tpu_custom_call.1} parent=5 // pred_check
        %p202 = pneg %p201
      $region30: #{tpu_custom_call.1} parent=5 // pred_check_branch
        %204 = sbr.rel (%p202) target = $region32
      $region31: #{tpu_custom_call.1} parent=5 // pred_region
        // Predicated region
        $region33: #{tpu_custom_call.1} parent=31 // pred_check
          %p205 = pneg %p38
        $region34: #{tpu_custom_call.1} parent=31 // pred_check_branch
          %207 = sbr.rel (%p205) target = $region36
        $region35: #{tpu_custom_call.1} parent=31 // pred_region
          %s208 = sand.u32 %s28, 1
          %s209 = scalar_lea.sflag [#allocation3], %s208
          %s210 = sand.u32 %s28, 1
          %s211 = smul.addr %s210, 128
          %s212 = scalar_lea.vmem [#allocation2], %s211
          %s214 = ssub.s32 2048, 2048
          %215 = vsyncadd %s209, %s214
          %s216 = smul.addr %s18, 32
          %s217 = smul.addr %s216, 64
          %s218 = scalar_lea.hbm %s0, %s217
          %s219 = sshll.u32 %s212, 4
          %s220 = int_to_ptr.vmem [resolvable:$true] %s219
          %225 = dma.hbm_to_vmem [thread:$0]  %s218, 2048, %s220, %s209, 64, 64, 4
        $region36: #{tpu_custom_call.1} parent=31 // pred_fallthru
          _
      $region32: #{tpu_custom_call.1} parent=5 // pred_fallthru
        _
      %p226 = scmp.le.s32.totalorder 1, %s18
      %p227 = scmp.lt.s32.totalorder %s18, 3
      %p228 = pnand %p226, %p227
      %p229 = pneg %p228
      // Predicated region
      $region37: #{tpu_custom_call.1} parent=5 // pred_check
        _
      $region38: #{tpu_custom_call.1} parent=5 // pred_check_branch
        %231 = sbr.rel (%p228) target = $region40
      $region39: #{tpu_custom_call.1} parent=5 // pred_region
        %s232 = ssub.s32 %s18, 1
        %s233 = sand.u32 %s31, 1
        %s234 = scalar_lea.sflag [#allocation3], %s233
        %s235 = sand.u32 %s31, 1
        %s236 = smul.addr %s235, 128
        %s237 = scalar_lea.vmem [#allocation2], %s236
        // Predicated region
        $region41: #{tpu_custom_call.1} parent=39 // pred_check
          %p238 = pneg %p44
        $region42: #{tpu_custom_call.1} parent=39 // pred_check_branch
          %240 = sbr.rel (%p238) target = $region44
        $region43: #{tpu_custom_call.1} parent=39 // pred_region
          %241 = dma.done %s234, 2048
        $region44: #{tpu_custom_call.1} parent=39 // pred_fallthru
          _
        // Predicated region
        $region45: #{tpu_custom_call.1} parent=39 // pred_check
          %p242 = pneg %p65
        $region46: #{tpu_custom_call.1} parent=39 // pred_check_branch
          %244 = sbr.rel (%p242) target = $region48
        $region47: #{tpu_custom_call.1} parent=39 // pred_region
          %245 = dma.done [#allocation6], 1024
        $region48: #{tpu_custom_call.1} parent=39 // pred_fallthru
          _
        // Predicated region
        $region49: #{tpu_custom_call.1} parent=39 // pred_check
          %p246 = pneg %p107
        $region50: #{tpu_custom_call.1} parent=39 // pred_check_branch
          %248 = sbr.rel (%p246) target = $region52
        $region51: #{tpu_custom_call.1} parent=39 // pred_region
          %249 = dma.done [#allocation6], 4096
        $region52: #{tpu_custom_call.1} parent=39 // pred_fallthru
          _
        %s250 = sand.u32 %s31, 1
        %s251 = scalar_lea.sflag [#allocation3], %s250
        %s252 = sand.u32 %s31, 1
        %s253 = smul.addr %s252, 128
        %s254 = scalar_lea.vmem [#allocation2], %s253
        %p255 = pneg %p44
        %p256 = pneg %p41
        %p257 = pneg %p65
        %p258 = pneg %p62
        %p259 = pneg %p86
        %p260 = pneg %p83
        %p261 = pneg %p107
        %p262 = pneg %p104
        %p263 = pneg %p128
        %p264 = pneg %p125
        %p265 = pneg %p154
        %p266 = pneg %p151
        %s267 = sand.u32 %s141, 1
        %s268 = scalar_lea.sflag [#allocation4], %s267
        %s269 = sand.u32 %s141, 1
        %s270 = scalar_lea.vmem [#allocation8], %s269
        %v272 = vld [vmem:[%s237] sm:$0xf]
        %v273 = vld [vmem:[%s237 + $0x4] sm:$0xf]
        %v274 = vld [vmem:[%s237 + $0x8] sm:$0xf]
        %v275 = vld [vmem:[%s237 + $0xc] sm:$0xf]
        %v276 = vld [vmem:[%s237 + $0x10] sm:$0xf]
        %v277 = vld [vmem:[%s237 + $0x14] sm:$0xf]
        %v278 = vld [vmem:[%s237 + $0x18] sm:$0xf]
        %v279 = vld [vmem:[%s237 + $0x1c] sm:$0xf]
        %v280 = vld [vmem:[%s237 + $0x20] sm:$0xf]
        %v281 = vld [vmem:[%s237 + $0x24] sm:$0xf]
        %v282 = vld [vmem:[%s237 + $0x28] sm:$0xf]
        %v283 = vld [vmem:[%s237 + $0x2c] sm:$0xf]
        %v284 = vld [vmem:[%s237 + $0x30] sm:$0xf]
        %v285 = vld [vmem:[%s237 + $0x34] sm:$0xf]
        %v286 = vld [vmem:[%s237 + $0x38] sm:$0xf]
        %v287 = vld [vmem:[%s237 + $0x3c] sm:$0xf]
        %v288 = vld [vmem:[%s237 + $0x40] sm:$0xf]
        %v289 = vld [vmem:[%s237 + $0x44] sm:$0xf]
        %v290 = vld [vmem:[%s237 + $0x48] sm:$0xf]
        %v291 = vld [vmem:[%s237 + $0x4c] sm:$0xf]
        %v292 = vld [vmem:[%s237 + $0x50] sm:$0xf]
        %v293 = vld [vmem:[%s237 + $0x54] sm:$0xf]
        %v294 = vld [vmem:[%s237 + $0x58] sm:$0xf]
        %v295 = vld [vmem:[%s237 + $0x5c] sm:$0xf]
        %v296 = vld [vmem:[%s237 + $0x60] sm:$0xf]
        %v297 = vld [vmem:[%s237 + $0x64] sm:$0xf]
        %v298 = vld [vmem:[%s237 + $0x68] sm:$0xf]
        %v299 = vld [vmem:[%s237 + $0x6c] sm:$0xf]
        %v300 = vld [vmem:[%s237 + $0x70] sm:$0xf]
        %v301 = vld [vmem:[%s237 + $0x74] sm:$0xf]
        %v302 = vld [vmem:[%s237 + $0x78] sm:$0xf]
        %v303 = vld [vmem:[%s237 + $0x7c] sm:$0xf]
        %v304 = vld [vmem:[#allocation5] sm:$0xf]
        %v305 = vld [vmem:[#allocation5 + $0x4] sm:$0xf]
        %v306 = vld [vmem:[#allocation5 + $0x8] sm:$0xf]
        %v307 = vld [vmem:[#allocation5 + $0xc] sm:$0xf]
        %v308 = vld [vmem:[#allocation5 + $0x10] sm:$0xf]
        %v309 = vld [vmem:[#allocation5 + $0x14] sm:$0xf]
        %v310 = vld [vmem:[#allocation5 + $0x18] sm:$0xf]
        %v311 = vld [vmem:[#allocation5 + $0x1c] sm:$0xf]
        %v312 = vld [vmem:[#allocation5 + $0x20] sm:$0xf]
        %v313 = vld [vmem:[#allocation5 + $0x24] sm:$0xf]
        %v314 = vld [vmem:[#allocation5 + $0x28] sm:$0xf]
        %v315 = vld [vmem:[#allocation5 + $0x2c] sm:$0xf]
        %v316 = vld [vmem:[#allocation5 + $0x30] sm:$0xf]
        %v317 = vld [vmem:[#allocation5 + $0x34] sm:$0xf]
        %v318 = vld [vmem:[#allocation5 + $0x38] sm:$0xf]
        %v319 = vld [vmem:[#allocation5 + $0x3c] sm:$0xf]
        %v320 = vld [vmem:[%s2] sm:$0x1]
        %v322 = vlaneseq
        %v323 = vshrl.u32 %v322, 7
        %v324 = vsub.s32 0, %v323
        %v325 = vrot.slane %v320, %v324
        %v359 = vunpack.c.l.b16 %v272
        %v360 = vunpack.c.l.b16 %v273
        %v361 = vunpack.c.l.b16 %v274
        %v362 = vunpack.c.l.b16 %v275
        %v363 = vunpack.c.l.b16 %v276
        %v364 = vunpack.c.l.b16 %v277
        %v365 = vunpack.c.l.b16 %v278
        %v366 = vunpack.c.l.b16 %v279
        %v367 = vunpack.c.l.b16 %v280
        %v368 = vunpack.c.l.b16 %v281
        %v369 = vunpack.c.l.b16 %v282
        %v370 = vunpack.c.l.b16 %v283
        %v371 = vunpack.c.l.b16 %v284
        %v372 = vunpack.c.l.b16 %v285
        %v373 = vunpack.c.l.b16 %v286
        %v374 = vunpack.c.l.b16 %v287
        %v375 = vunpack.c.l.b16 %v288
        %v376 = vunpack.c.l.b16 %v289
        %v377 = vunpack.c.l.b16 %v290
        %v378 = vunpack.c.l.b16 %v291
        %v379 = vunpack.c.l.b16 %v292
        %v380 = vunpack.c.l.b16 %v293
        %v381 = vunpack.c.l.b16 %v294
        %v382 = vunpack.c.l.b16 %v295
        %v383 = vunpack.c.l.b16 %v296
        %v384 = vunpack.c.l.b16 %v297
        %v385 = vunpack.c.l.b16 %v298
        %v386 = vunpack.c.l.b16 %v299
        %v387 = vunpack.c.l.b16 %v300
        %v388 = vunpack.c.l.b16 %v301
        %v389 = vunpack.c.l.b16 %v302
        %v390 = vunpack.c.l.b16 %v303
        %v391 = vpack.c.b16 %v360, %v359
        %v392 = vpack.c.b16 %v362, %v361
        %v393 = vpack.c.b16 %v364, %v363
        %v394 = vpack.c.b16 %v366, %v365
        %v395 = vpack.c.b16 %v368, %v367
        %v396 = vpack.c.b16 %v370, %v369
        %v397 = vpack.c.b16 %v372, %v371
        %v398 = vpack.c.b16 %v374, %v373
        %v399 = vpack.c.b16 %v376, %v375
        %v400 = vpack.c.b16 %v378, %v377
        %v401 = vpack.c.b16 %v380, %v379
        %v402 = vpack.c.b16 %v382, %v381
        %v403 = vpack.c.b16 %v384, %v383
        %v404 = vpack.c.b16 %v386, %v385
        %v405 = vpack.c.b16 %v388, %v387
        %v406 = vpack.c.b16 %v390, %v389
        %v439 = vunpack.c.l.b16 %v304
        %v440 = vunpack.c.l.b16 %v305
        %v441 = vunpack.c.l.b16 %v306
        %v442 = vunpack.c.l.b16 %v307
        %v443 = vunpack.c.l.b16 %v308
        %v444 = vunpack.c.l.b16 %v309
        %v445 = vunpack.c.l.b16 %v310
        %v446 = vunpack.c.l.b16 %v311
        %v447 = vunpack.c.l.b16 %v312
        %v448 = vunpack.c.l.b16 %v313
        %v449 = vunpack.c.l.b16 %v314
        %v450 = vunpack.c.l.b16 %v315
        %v451 = vunpack.c.l.b16 %v316
        %v452 = vunpack.c.l.b16 %v317
        %v453 = vunpack.c.l.b16 %v318
        %v454 = vunpack.c.l.b16 %v319
        %v455 = vpack.c.b16 %v440, %v439
        %v456 = vpack.c.b16 %v442, %v441
        %v457 = vpack.c.b16 %v444, %v443
        %v458 = vpack.c.b16 %v446, %v445
        %v459 = vpack.c.b16 %v448, %v447
        %v460 = vpack.c.b16 %v450, %v449
        %v461 = vpack.c.b16 %v452, %v451
        %v462 = vpack.c.b16 %v454, %v453
        %471 = vmatprep.subr.bf16.mxu0 0
        %472 = vmatpush1.bf16.msra.mxu0 %v462
        %473 = vmatprep.subr.bf16.mxu0 0
        %474 = vmatpush1.bf16.msra.mxu0 %v461
        %475 = vmatprep.subr.bf16.mxu0 0
        %476 = vmatpush1.bf16.msra.mxu0 %v460
        %477 = vmatprep.subr.bf16.mxu0 0
        %478 = vmatpush1.bf16.msra.mxu0 %v459
        %479 = vmatprep.subr.bf16.mxu0 0
        %480 = vmatpush1.bf16.msra.mxu0 %v458
        %481 = vmatprep.subr.bf16.mxu0 0
        %482 = vmatpush1.bf16.msra.mxu0 %v457
        %483 = vmatprep.subr.bf16.mxu0 0
        %484 = vmatpush1.bf16.msra.mxu0 %v456
        %485 = vmatprep.subr.bf16.mxu0 0
        %486 = vmatpush1.bf16.msra.mxu0 %v455
        %487 = vmatprep.subr.bf16.mxu0 0
        %488 = vmatpush2.bf16.msra.mxu0 0
        %489 = vmatprep.subr.bf16.mxu0 0
        %490 = vmatpush2.bf16.msra.mxu0 0
        %491 = vmatprep.subr.bf16.mxu0 0
        %492 = vmatpush2.bf16.msra.mxu0 0
        %493 = vmatprep.subr.bf16.mxu0 0
        %494 = vmatpush2.bf16.msra.mxu0 0
        %495 = vmatprep.subr.bf16.mxu0 0
        %496 = vmatpush2.bf16.msra.mxu0 0
        %497 = vmatprep.subr.bf16.mxu0 0
        %498 = vmatpush2.bf16.msra.mxu0 0
        %499 = vmatprep.subr.bf16.mxu0 0
        %500 = vmatpush2.bf16.msra.mxu0 0
        %501 = vmatprep.subr.bf16.mxu0 0
        %502 = vmatpush2.bf16.msra.mxu0 0
        %503 = vmatprep.mubr.bf16.mxu0 0
        %504 = vmatmul.mubr.bf16.gmra.mxu0 %v391
        %v505 = vpop.f32.mrf.mxu0
        %v506 = vadd.f32 %v325, %v505
        %v507 = vpop.f32.mrf.mxu0
        %v508 = vpop.f32.mrf.mxu0
        %v509 = vadd.f32 %v325, %v508
        %v510 = vpop.f32.mrf.mxu0
        %511 = vmatprep.mubr.bf16.mxu0 0
        %512 = vmatmul.mubr.bf16.gmra.mxu0 %v392
        %v513 = vpop.f32.mrf.mxu0
        %v514 = vadd.f32 %v325, %v513
        %v515 = vpop.f32.mrf.mxu0
        %v516 = vpop.f32.mrf.mxu0
        %v517 = vadd.f32 %v325, %v516
        %v518 = vpop.f32.mrf.mxu0
        %519 = vmatprep.mubr.bf16.mxu0 0
        %520 = vmatmul.mubr.bf16.gmra.mxu0 %v393
        %v521 = vpop.f32.mrf.mxu0
        %v522 = vadd.f32 %v325, %v521
        %v523 = vpop.f32.mrf.mxu0
        %v524 = vpop.f32.mrf.mxu0
        %v525 = vadd.f32 %v325, %v524
        %v526 = vpop.f32.mrf.mxu0
        %527 = vmatprep.mubr.bf16.mxu0 0
        %528 = vmatmul.mubr.bf16.gmra.mxu0 %v394
        %v529 = vpop.f32.mrf.mxu0
        %v530 = vadd.f32 %v325, %v529
        %v531 = vpop.f32.mrf.mxu0
        %v532 = vpop.f32.mrf.mxu0
        %v533 = vadd.f32 %v325, %v532
        %v534 = vpop.f32.mrf.mxu0
        %535 = vmatprep.mubr.bf16.mxu0 0
        %536 = vmatmul.mubr.bf16.gmra.mxu0 %v395
        %v537 = vpop.f32.mrf.mxu0
        %v538 = vadd.f32 %v325, %v537
        %v539 = vpop.f32.mrf.mxu0
        %v540 = vpop.f32.mrf.mxu0
        %v541 = vadd.f32 %v325, %v540
        %v542 = vpop.f32.mrf.mxu0
        %543 = vmatprep.mubr.bf16.mxu0 0
        %544 = vmatmul.mubr.bf16.gmra.mxu0 %v396
        %v545 = vpop.f32.mrf.mxu0
        %v546 = vadd.f32 %v325, %v545
        %v547 = vpop.f32.mrf.mxu0
        %v548 = vpop.f32.mrf.mxu0
        %v549 = vadd.f32 %v325, %v548
        %v550 = vpop.f32.mrf.mxu0
        %551 = vmatprep.mubr.bf16.mxu0 0
        %552 = vmatmul.mubr.bf16.gmra.mxu0 %v397
        %v553 = vpop.f32.mrf.mxu0
        %v554 = vadd.f32 %v325, %v553
        %v555 = vpop.f32.mrf.mxu0
        %v556 = vpop.f32.mrf.mxu0
        %v557 = vadd.f32 %v325, %v556
        %v558 = vpop.f32.mrf.mxu0
        %559 = vmatprep.mubr.bf16.mxu0 0
        %560 = vmatmul.mubr.bf16.gmra.mxu0 %v398
        %v561 = vpop.f32.mrf.mxu0
        %v562 = vadd.f32 %v325, %v561
        %v563 = vpop.f32.mrf.mxu0
        %v564 = vpop.f32.mrf.mxu0
        %v565 = vadd.f32 %v325, %v564
        %v566 = vpop.f32.mrf.mxu0
        %567 = vmatprep.mubr.bf16.mxu0 0
        %568 = vmatmul.mubr.bf16.gmra.mxu0 %v399
        %v569 = vpop.f32.mrf.mxu0
        %v570 = vadd.f32 %v325, %v569
        %v571 = vpop.f32.mrf.mxu0
        %v572 = vpop.f32.mrf.mxu0
        %v573 = vadd.f32 %v325, %v572
        %v574 = vpop.f32.mrf.mxu0
        %575 = vmatprep.mubr.bf16.mxu0 0
        %576 = vmatmul.mubr.bf16.gmra.mxu0 %v400
        %v577 = vpop.f32.mrf.mxu0
        %v578 = vadd.f32 %v325, %v577
        %v579 = vpop.f32.mrf.mxu0
        %v580 = vpop.f32.mrf.mxu0
        %v581 = vadd.f32 %v325, %v580
        %v582 = vpop.f32.mrf.mxu0
        %583 = vmatprep.mubr.bf16.mxu0 0
        %584 = vmatmul.mubr.bf16.gmra.mxu0 %v401
        %v585 = vpop.f32.mrf.mxu0
        %v586 = vadd.f32 %v325, %v585
        %v587 = vpop.f32.mrf.mxu0
        %v588 = vpop.f32.mrf.mxu0
        %v589 = vadd.f32 %v325, %v588
        %v590 = vpop.f32.mrf.mxu0
        %591 = vmatprep.mubr.bf16.mxu0 0
        %592 = vmatmul.mubr.bf16.gmra.mxu0 %v402
        %v593 = vpop.f32.mrf.mxu0
        %v594 = vadd.f32 %v325, %v593
        %v595 = vpop.f32.mrf.mxu0
        %v596 = vpop.f32.mrf.mxu0
        %v597 = vadd.f32 %v325, %v596
        %v598 = vpop.f32.mrf.mxu0
        %599 = vmatprep.mubr.bf16.mxu0 0
        %600 = vmatmul.mubr.bf16.gmra.mxu0 %v403
        %v601 = vpop.f32.mrf.mxu0
        %v602 = vadd.f32 %v325, %v601
        %v603 = vpop.f32.mrf.mxu0
        %v604 = vpop.f32.mrf.mxu0
        %v605 = vadd.f32 %v325, %v604
        %v606 = vpop.f32.mrf.mxu0
        %607 = vmatprep.mubr.bf16.mxu0 0
        %608 = vmatmul.mubr.bf16.gmra.mxu0 %v404
        %v609 = vpop.f32.mrf.mxu0
        %v610 = vadd.f32 %v325, %v609
        %v611 = vpop.f32.mrf.mxu0
        %v612 = vpop.f32.mrf.mxu0
        %v613 = vadd.f32 %v325, %v612
        %v614 = vpop.f32.mrf.mxu0
        %615 = vmatprep.mubr.bf16.mxu0 0
        %616 = vmatmul.mubr.bf16.gmra.mxu0 %v405
        %v617 = vpop.f32.mrf.mxu0
        %v618 = vadd.f32 %v325, %v617
        %v619 = vpop.f32.mrf.mxu0
        %v620 = vpop.f32.mrf.mxu0
        %v621 = vadd.f32 %v325, %v620
        %v622 = vpop.f32.mrf.mxu0
        %623 = vmatprep.mubr.bf16.mxu0 0
        %624 = vmatmul.mubr.bf16.gmra.mxu0 %v406
        %v625 = vpop.f32.mrf.mxu0
        %v626 = vadd.f32 %v325, %v625
        %v627 = vpop.f32.mrf.mxu0
        %v628 = vpop.f32.mrf.mxu0
        %v629 = vadd.f32 %v325, %v628
        %v630 = vpop.f32.mrf.mxu0
        %631 = vdwg.mxu0
        %v632 = vmax.f32 %v506, 0.0
        %v633 = vmax.f32 %v509, 0.0
        %v634 = vmax.f32 %v514, 0.0
        %v635 = vmax.f32 %v517, 0.0
        %v636 = vmax.f32 %v522, 0.0
        %v637 = vmax.f32 %v525, 0.0
        %v638 = vmax.f32 %v530, 0.0
        %v639 = vmax.f32 %v533, 0.0
        %v640 = vmax.f32 %v538, 0.0
        %v641 = vmax.f32 %v541, 0.0
        %v642 = vmax.f32 %v546, 0.0
        %v643 = vmax.f32 %v549, 0.0
        %v644 = vmax.f32 %v554, 0.0
        %v645 = vmax.f32 %v557, 0.0
        %v646 = vmax.f32 %v562, 0.0
        %v647 = vmax.f32 %v565, 0.0
        %v648 = vmax.f32 %v570, 0.0
        %v649 = vmax.f32 %v573, 0.0
        %v650 = vmax.f32 %v578, 0.0
        %v651 = vmax.f32 %v581, 0.0
        %v652 = vmax.f32 %v586, 0.0
        %v653 = vmax.f32 %v589, 0.0
        %v654 = vmax.f32 %v594, 0.0
        %v655 = vmax.f32 %v597, 0.0
        %v656 = vmax.f32 %v602, 0.0
        %v657 = vmax.f32 %v605, 0.0
        %v658 = vmax.f32 %v610, 0.0
        %v659 = vmax.f32 %v613, 0.0
        %v660 = vmax.f32 %v618, 0.0
        %v661 = vmax.f32 %v621, 0.0
        %v662 = vmax.f32 %v626, 0.0
        %v663 = vmax.f32 %v629, 0.0
        %v664 = vmax.f32 %v632, %v640
        %v665 = vmax.f32 %v633, %v641
        %v666 = vmax.f32 %v634, %v642
        %v667 = vmax.f32 %v635, %v643
        %v668 = vmax.f32 %v636, %v644
        %v669 = vmax.f32 %v637, %v645
        %v670 = vmax.f32 %v638, %v646
        %v671 = vmax.f32 %v639, %v647
        %v672 = vmax.f32 %v648, %v656
        %v673 = vmax.f32 %v649, %v657
        %v674 = vmax.f32 %v650, %v658
        %v675 = vmax.f32 %v651, %v659
        %v676 = vmax.f32 %v652, %v660
        %v677 = vmax.f32 %v653, %v661
        %v678 = vmax.f32 %v654, %v662
        %v679 = vmax.f32 %v655, %v663
        %v680 = vmax.f32 %v664, %v672
        %v681 = vmax.f32 %v665, %v673
        %v682 = vmax.f32 %v666, %v674
        %v683 = vmax.f32 %v667, %v675
        %v684 = vmax.f32 %v668, %v676
        %v685 = vmax.f32 %v669, %v677
        %v686 = vmax.f32 %v670, %v678
        %v687 = vmax.f32 %v671, %v679
        %688 = vxpose.xlu0.b32.start [1/16] %v680, 128
        %689 = vxpose.xlu0.b32.cont [2/16] %v681, 128
        %690 = vxpose.xlu0.b32.cont [3/16] %v682, 128
        %691 = vxpose.xlu0.b32.cont [4/16] %v683, 128
        %692 = vxpose.xlu0.b32.cont [5/16] %v684, 128
        %693 = vxpose.xlu0.b32.cont [6/16] %v685, 128
        %694 = vxpose.xlu0.b32.cont [7/16] %v686, 128
        %695 = vxpose.xlu0.b32.cont [8/16] %v687, 128
        %696 = vxpose.xlu0.b32.cont [9/16] 0.0, 128
        %697 = vxpose.xlu0.b32.cont [10/16] 0.0, 128
        %698 = vxpose.xlu0.b32.cont [11/16] 0.0, 128
        %699 = vxpose.xlu0.b32.cont [12/16] 0.0, 128
        %700 = vxpose.xlu0.b32.cont [13/16] 0.0, 128
        %701 = vxpose.xlu0.b32.cont [14/16] 0.0, 128
        %702 = vxpose.xlu0.b32.cont [15/16] 0.0, 128
        %703 = vxpose.xlu0.b32.end [16/16] 0.0, 128
        %v704 = vpop.trf.xlu0
        %v705 = vpop.trf.xlu0
        %v706 = vpop.trf.xlu0
        %v707 = vpop.trf.xlu0
        %v708 = vpop.trf.xlu0
        %v709 = vpop.trf.xlu0
        %v710 = vpop.trf.xlu0
        %v711 = vpop.trf.xlu0
        %v712 = vpop.trf.xlu0
        %v713 = vpop.trf.xlu0
        %v714 = vpop.trf.xlu0
        %v715 = vpop.trf.xlu0
        %v716 = vpop.trf.xlu0
        %v717 = vpop.trf.xlu0
        %v718 = vpop.trf.xlu0
        %v719 = vpop.trf.xlu0
        %v720 = vpack.c.bf16 %v704, %v704
        %v721 = vld [vmem:[#allocation7] sm:$0xf]
        %v722 = vld [vmem:[#allocation7 + $0x4] sm:$0xf]
        %v723 = vld [vmem:[#allocation7 + $0x8] sm:$0xf]
        %v724 = vld [vmem:[#allocation7 + $0xc] sm:$0xf]
        %v725 = vld [vmem:[#allocation7 + $0x10] sm:$0xf]
        %v726 = vld [vmem:[#allocation7 + $0x14] sm:$0xf]
        %v727 = vld [vmem:[#allocation7 + $0x18] sm:$0xf]
        %v728 = vld [vmem:[#allocation7 + $0x1c] sm:$0xf]
        %s729 = scalar_lea.vmem [#allocation7], 32
        %v730 = vld [vmem:[%s729] sm:$0xf]
        %v731 = vld [vmem:[%s729 + $0x4] sm:$0xf]
        %v732 = vld [vmem:[%s729 + $0x8] sm:$0xf]
        %v733 = vld [vmem:[%s729 + $0xc] sm:$0xf]
        %v734 = vld [vmem:[%s729 + $0x10] sm:$0xf]
        %v735 = vld [vmem:[%s729 + $0x14] sm:$0xf]
        %v736 = vld [vmem:[%s729 + $0x18] sm:$0xf]
        %v737 = vld [vmem:[%s729 + $0x1c] sm:$0xf]
        %v739 = vshrl.u32 %v720, 16
        %v749 = vunpack.c.l.b16 %v730
        %v750 = vunpack.c.l.b16 %v731
        %v751 = vunpack.c.l.b16 %v732
        %v752 = vunpack.c.l.b16 %v733
        %v753 = vunpack.c.l.b16 %v734
        %v754 = vunpack.c.l.b16 %v735
        %v755 = vunpack.c.l.b16 %v736
        %v756 = vunpack.c.l.b16 %v737
        %v757 = vpack.c.b16 %v750, %v749
        %v758 = vpack.c.b16 %v752, %v751
        %v759 = vpack.c.b16 %v754, %v753
        %v760 = vpack.c.b16 %v756, %v755
        %vm765 = vcmask 523264
        %v767 = vsel %vm765, %v739, 0
        %769 = vmatprep.subr.bf16.mxu0 0
        %770 = vmatpush1.bf16.msra.mxu0 0
        %771 = vmatprep.subr.bf16.mxu0 0
        %772 = vmatpush1.bf16.msra.mxu0 0
        %773 = vmatprep.subr.bf16.mxu0 0
        %774 = vmatpush1.bf16.msra.mxu0 0
        %775 = vmatprep.subr.bf16.mxu0 0
        %776 = vmatpush1.bf16.msra.mxu0 0
        %777 = vmatprep.subr.bf16.mxu0 0
        %778 = vmatpush1.bf16.msra.mxu0 %v760
        %779 = vmatprep.subr.bf16.mxu0 0
        %780 = vmatpush1.bf16.msra.mxu0 %v759
        %781 = vmatprep.subr.bf16.mxu0 0
        %782 = vmatpush1.bf16.msra.mxu0 %v758
        %783 = vmatprep.subr.bf16.mxu0 0
        %784 = vmatpush1.bf16.msra.mxu0 %v757
        %785 = vmatprep.subr.bf16.mxu0 0
        %786 = vmatpush2.bf16.msra.mxu0 0
        %787 = vmatprep.subr.bf16.mxu0 0
        %788 = vmatpush2.bf16.msra.mxu0 0
        %789 = vmatprep.subr.bf16.mxu0 0
        %790 = vmatpush2.bf16.msra.mxu0 0
        %791 = vmatprep.subr.bf16.mxu0 0
        %792 = vmatpush2.bf16.msra.mxu0 0
        %793 = vmatprep.subr.bf16.mxu0 0
        %794 = vmatpush2.bf16.msra.mxu0 0
        %795 = vmatprep.subr.bf16.mxu0 0
        %796 = vmatpush2.bf16.msra.mxu0 0
        %797 = vmatprep.subr.bf16.mxu0 0
        %798 = vmatpush2.bf16.msra.mxu0 0
        %799 = vmatprep.subr.bf16.mxu0 0
        %800 = vmatpush2.bf16.msra.mxu0 0
        %801 = vmatprep.mubr.bf16.mxu0 0
        %802 = vmatmul.mubr.bf16.gmra.mxu0 %v767
        %v803 = vpop.f32.mrf.mxu0
        %v804 = vadd.f32 0.0, %v803
        %v805 = vpop.f32.mrf.mxu0
        %v806 = vpop.f32.mrf.mxu0
        %v807 = vpop.f32.mrf.mxu0
        %808 = vdwg.mxu0
        %v817 = vunpack.c.l.b16 %v721
        %v818 = vunpack.c.l.b16 %v722
        %v819 = vunpack.c.l.b16 %v723
        %v820 = vunpack.c.l.b16 %v724
        %v821 = vunpack.c.l.b16 %v725
        %v822 = vunpack.c.l.b16 %v726
        %v823 = vunpack.c.l.b16 %v727
        %v824 = vunpack.c.l.b16 %v728
        %v825 = vpack.c.b16 %v818, %v817
        %v826 = vpack.c.b16 %v820, %v819
        %v827 = vpack.c.b16 %v822, %v821
        %v828 = vpack.c.b16 %v824, %v823
        %v833 = vsel %vm765, %v720, 0
        %835 = vmatprep.subr.bf16.mxu0 0
        %836 = vmatpush1.bf16.msra.mxu0 0
        %837 = vmatprep.subr.bf16.mxu0 0
        %838 = vmatpush1.bf16.msra.mxu0 0
        %839 = vmatprep.subr.bf16.mxu0 0
        %840 = vmatpush1.bf16.msra.mxu0 0
        %841 = vmatprep.subr.bf16.mxu0 0
        %842 = vmatpush1.bf16.msra.mxu0 0
        %843 = vmatprep.subr.bf16.mxu0 0
        %844 = vmatpush1.bf16.msra.mxu0 %v828
        %845 = vmatprep.subr.bf16.mxu0 0
        %846 = vmatpush1.bf16.msra.mxu0 %v827
        %847 = vmatprep.subr.bf16.mxu0 0
        %848 = vmatpush1.bf16.msra.mxu0 %v826
        %849 = vmatprep.subr.bf16.mxu0 0
        %850 = vmatpush1.bf16.msra.mxu0 %v825
        %851 = vmatprep.subr.bf16.mxu0 0
        %852 = vmatpush2.bf16.msra.mxu0 0
        %853 = vmatprep.subr.bf16.mxu0 0
        %854 = vmatpush2.bf16.msra.mxu0 0
        %855 = vmatprep.subr.bf16.mxu0 0
        %856 = vmatpush2.bf16.msra.mxu0 0
        %857 = vmatprep.subr.bf16.mxu0 0
        %858 = vmatpush2.bf16.msra.mxu0 0
        %859 = vmatprep.subr.bf16.mxu0 0
        %860 = vmatpush2.bf16.msra.mxu0 0
        %861 = vmatprep.subr.bf16.mxu0 0
        %862 = vmatpush2.bf16.msra.mxu0 0
        %863 = vmatprep.subr.bf16.mxu0 0
        %864 = vmatpush2.bf16.msra.mxu0 0
        %865 = vmatprep.subr.bf16.mxu0 0
        %866 = vmatpush2.bf16.msra.mxu0 0
        %867 = vmatprep.mubr.bf16.mxu0 0
        %868 = vmatmul.mubr.bf16.gmra.mxu0 %v833
        %v869 = vpop.f32.mrf.mxu0
        %v870 = vadd.f32 %v804, %v869
        %v871 = vpop.f32.mrf.mxu0
        %v872 = vpop.f32.mrf.mxu0
        %v873 = vpop.f32.mrf.mxu0
        %874 = vdwg.mxu0
        %s875 = scalar_lea.vmem [#allocation7], 64
        %v876 = vld [vmem:[%s875] sm:$0xf]
        %v877 = vld [vmem:[%s875 + $0x4] sm:$0xf]
        %v878 = vld [vmem:[%s875 + $0x8] sm:$0xf]
        %v879 = vld [vmem:[%s875 + $0xc] sm:$0xf]
        %v880 = vld [vmem:[%s875 + $0x10] sm:$0xf]
        %v881 = vld [vmem:[%s875 + $0x14] sm:$0xf]
        %v882 = vld [vmem:[%s875 + $0x18] sm:$0xf]
        %v883 = vld [vmem:[%s875 + $0x1c] sm:$0xf]
        %v885 = vrot.slane %v720, 1
        %v894 = vunpack.c.l.b16 %v876
        %v895 = vunpack.c.l.b16 %v877
        %v896 = vunpack.c.l.b16 %v878
        %v897 = vunpack.c.l.b16 %v879
        %v898 = vunpack.c.l.b16 %v880
        %v899 = vunpack.c.l.b16 %v881
        %v900 = vunpack.c.l.b16 %v882
        %v901 = vunpack.c.l.b16 %v883
        %v902 = vpack.c.b16 %v895, %v894
        %v903 = vpack.c.b16 %v897, %v896
        %v904 = vpack.c.b16 %v899, %v898
        %v905 = vpack.c.b16 %v901, %v900
        %v911 = vsel %vm765, %v885, 0
        %913 = vmatprep.subr.bf16.mxu0 0
        %914 = vmatpush1.bf16.msra.mxu0 0
        %915 = vmatprep.subr.bf16.mxu0 0
        %916 = vmatpush1.bf16.msra.mxu0 0
        %917 = vmatprep.subr.bf16.mxu0 0
        %918 = vmatpush1.bf16.msra.mxu0 0
        %919 = vmatprep.subr.bf16.mxu0 0
        %920 = vmatpush1.bf16.msra.mxu0 0
        %921 = vmatprep.subr.bf16.mxu0 0
        %922 = vmatpush1.bf16.msra.mxu0 %v905
        %923 = vmatprep.subr.bf16.mxu0 0
        %924 = vmatpush1.bf16.msra.mxu0 %v904
        %925 = vmatprep.subr.bf16.mxu0 0
        %926 = vmatpush1.bf16.msra.mxu0 %v903
        %927 = vmatprep.subr.bf16.mxu0 0
        %928 = vmatpush1.bf16.msra.mxu0 %v902
        %929 = vmatprep.subr.bf16.mxu0 0
        %930 = vmatpush2.bf16.msra.mxu0 0
        %931 = vmatprep.subr.bf16.mxu0 0
        %932 = vmatpush2.bf16.msra.mxu0 0
        %933 = vmatprep.subr.bf16.mxu0 0
        %934 = vmatpush2.bf16.msra.mxu0 0
        %935 = vmatprep.subr.bf16.mxu0 0
        %936 = vmatpush2.bf16.msra.mxu0 0
        %937 = vmatprep.subr.bf16.mxu0 0
        %938 = vmatpush2.bf16.msra.mxu0 0
        %939 = vmatprep.subr.bf16.mxu0 0
        %940 = vmatpush2.bf16.msra.mxu0 0
        %941 = vmatprep.subr.bf16.mxu0 0
        %942 = vmatpush2.bf16.msra.mxu0 0
        %943 = vmatprep.subr.bf16.mxu0 0
        %944 = vmatpush2.bf16.msra.mxu0 0
        %945 = vmatprep.mubr.bf16.mxu0 0
        %946 = vmatmul.mubr.bf16.gmra.mxu0 %v911
        %v947 = vpop.f32.mrf.mxu0
        %v948 = vadd.f32 0.0, %v947
        %v949 = vpop.f32.mrf.mxu0
        %v950 = vpop.f32.mrf.mxu0
        %v951 = vpop.f32.mrf.mxu0
        %952 = vdwg.mxu0
        %v953 = vadd.f32 %v870, %v948
        %s954 = scalar_lea.vmem [#allocation7], 96
        %v955 = vld [vmem:[%s954] sm:$0xf]
        %v956 = vld [vmem:[%s954 + $0x4] sm:$0xf]
        %v957 = vld [vmem:[%s954 + $0x8] sm:$0xf]
        %v958 = vld [vmem:[%s954 + $0xc] sm:$0xf]
        %v959 = vld [vmem:[%s954 + $0x10] sm:$0xf]
        %v960 = vld [vmem:[%s954 + $0x14] sm:$0xf]
        %v961 = vld [vmem:[%s954 + $0x18] sm:$0xf]
        %v962 = vld [vmem:[%s954 + $0x1c] sm:$0xf]
        %v963 = vrot.slane %v739, 1
        %v972 = vunpack.c.l.b16 %v955
        %v973 = vunpack.c.l.b16 %v956
        %v974 = vunpack.c.l.b16 %v957
        %v975 = vunpack.c.l.b16 %v958
        %v976 = vunpack.c.l.b16 %v959
        %v977 = vunpack.c.l.b16 %v960
        %v978 = vunpack.c.l.b16 %v961
        %v979 = vunpack.c.l.b16 %v962
        %v980 = vpack.c.b16 %v973, %v972
        %v981 = vpack.c.b16 %v975, %v974
        %v982 = vpack.c.b16 %v977, %v976
        %v983 = vpack.c.b16 %v979, %v978
        %v989 = vsel %vm765, %v963, 0
        %991 = vmatprep.subr.bf16.mxu0 0
        %992 = vmatpush1.bf16.msra.mxu0 0
        %993 = vmatprep.subr.bf16.mxu0 0
        %994 = vmatpush1.bf16.msra.mxu0 0
        %995 = vmatprep.subr.bf16.mxu0 0
        %996 = vmatpush1.bf16.msra.mxu0 0
        %997 = vmatprep.subr.bf16.mxu0 0
        %998 = vmatpush1.bf16.msra.mxu0 0
        %999 = vmatprep.subr.bf16.mxu0 0
        %1000 = vmatpush1.bf16.msra.mxu0 %v983
        %1001 = vmatprep.subr.bf16.mxu0 0
        %1002 = vmatpush1.bf16.msra.mxu0 %v982
        %1003 = vmatprep.subr.bf16.mxu0 0
        %1004 = vmatpush1.bf16.msra.mxu0 %v981
        %1005 = vmatprep.subr.bf16.mxu0 0
        %1006 = vmatpush1.bf16.msra.mxu0 %v980
        %1007 = vmatprep.subr.bf16.mxu0 0
        %1008 = vmatpush2.bf16.msra.mxu0 0
        %1009 = vmatprep.subr.bf16.mxu0 0
        %1010 = vmatpush2.bf16.msra.mxu0 0
        %1011 = vmatprep.subr.bf16.mxu0 0
        %1012 = vmatpush2.bf16.msra.mxu0 0
        %1013 = vmatprep.subr.bf16.mxu0 0
        %1014 = vmatpush2.bf16.msra.mxu0 0
        %1015 = vmatprep.subr.bf16.mxu0 0
        %1016 = vmatpush2.bf16.msra.mxu0 0
        %1017 = vmatprep.subr.bf16.mxu0 0
        %1018 = vmatpush2.bf16.msra.mxu0 0
        %1019 = vmatprep.subr.bf16.mxu0 0
        %1020 = vmatpush2.bf16.msra.mxu0 0
        %1021 = vmatprep.subr.bf16.mxu0 0
        %1022 = vmatpush2.bf16.msra.mxu0 0
        %1023 = vmatprep.mubr.bf16.mxu0 0
        %1024 = vmatmul.mubr.bf16.gmra.mxu0 %v989
        %v1025 = vpop.f32.mrf.mxu0
        %v1026 = vadd.f32 0.0, %v1025
        %v1027 = vpop.f32.mrf.mxu0
        %v1028 = vpop.f32.mrf.mxu0
        %v1029 = vpop.f32.mrf.mxu0
        %1030 = vdwg.mxu0
        %v1031 = vadd.f32 %v953, %v1026
        %s1032 = scalar_lea.vmem [#allocation7], 128
        %v1033 = vld [vmem:[%s1032] sm:$0xf]
        %v1034 = vld [vmem:[%s1032 + $0x4] sm:$0xf]
        %v1035 = vld [vmem:[%s1032 + $0x8] sm:$0xf]
        %v1036 = vld [vmem:[%s1032 + $0xc] sm:$0xf]
        %v1037 = vld [vmem:[%s1032 + $0x10] sm:$0xf]
        %v1038 = vld [vmem:[%s1032 + $0x14] sm:$0xf]
        %v1039 = vld [vmem:[%s1032 + $0x18] sm:$0xf]
        %v1040 = vld [vmem:[%s1032 + $0x1c] sm:$0xf]
        %v1041 = vrot.slane %v720, 2
        %v1050 = vunpack.c.l.b16 %v1033
        %v1051 = vunpack.c.l.b16 %v1034
        %v1052 = vunpack.c.l.b16 %v1035
        %v1053 = vunpack.c.l.b16 %v1036
        %v1054 = vunpack.c.l.b16 %v1037
        %v1055 = vunpack.c.l.b16 %v1038
        %v1056 = vunpack.c.l.b16 %v1039
        %v1057 = vunpack.c.l.b16 %v1040
        %v1058 = vpack.c.b16 %v1051, %v1050
        %v1059 = vpack.c.b16 %v1053, %v1052
        %v1060 = vpack.c.b16 %v1055, %v1054
        %v1061 = vpack.c.b16 %v1057, %v1056
        %v1067 = vsel %vm765, %v1041, 0
        %1069 = vmatprep.subr.bf16.mxu0 0
        %1070 = vmatpush1.bf16.msra.mxu0 0
        %1071 = vmatprep.subr.bf16.mxu0 0
        %1072 = vmatpush1.bf16.msra.mxu0 0
        %1073 = vmatprep.subr.bf16.mxu0 0
        %1074 = vmatpush1.bf16.msra.mxu0 0
        %1075 = vmatprep.subr.bf16.mxu0 0
        %1076 = vmatpush1.bf16.msra.mxu0 0
        %1077 = vmatprep.subr.bf16.mxu0 0
        %1078 = vmatpush1.bf16.msra.mxu0 %v1061
        %1079 = vmatprep.subr.bf16.mxu0 0
        %1080 = vmatpush1.bf16.msra.mxu0 %v1060
        %1081 = vmatprep.subr.bf16.mxu0 0
        %1082 = vmatpush1.bf16.msra.mxu0 %v1059
        %1083 = vmatprep.subr.bf16.mxu0 0
        %1084 = vmatpush1.bf16.msra.mxu0 %v1058
        %1085 = vmatprep.subr.bf16.mxu0 0
        %1086 = vmatpush2.bf16.msra.mxu0 0
        %1087 = vmatprep.subr.bf16.mxu0 0
        %1088 = vmatpush2.bf16.msra.mxu0 0
        %1089 = vmatprep.subr.bf16.mxu0 0
        %1090 = vmatpush2.bf16.msra.mxu0 0
        %1091 = vmatprep.subr.bf16.mxu0 0
        %1092 = vmatpush2.bf16.msra.mxu0 0
        %1093 = vmatprep.subr.bf16.mxu0 0
        %1094 = vmatpush2.bf16.msra.mxu0 0
        %1095 = vmatprep.subr.bf16.mxu0 0
        %1096 = vmatpush2.bf16.msra.mxu0 0
        %1097 = vmatprep.subr.bf16.mxu0 0
        %1098 = vmatpush2.bf16.msra.mxu0 0
        %1099 = vmatprep.subr.bf16.mxu0 0
        %1100 = vmatpush2.bf16.msra.mxu0 0
        %1101 = vmatprep.mubr.bf16.mxu0 0
        %1102 = vmatmul.mubr.bf16.gmra.mxu0 %v1067
        %v1103 = vpop.f32.mrf.mxu0
        %v1104 = vadd.f32 0.0, %v1103
        %v1105 = vpop.f32.mrf.mxu0
        %v1106 = vpop.f32.mrf.mxu0
        %v1107 = vpop.f32.mrf.mxu0
        %1108 = vdwg.mxu0
        %v1109 = vadd.f32 %v1031, %v1104
        %s1110 = scalar_lea.vmem [#allocation7], 160
        %v1111 = vld [vmem:[%s1110] sm:$0xf]
        %v1112 = vld [vmem:[%s1110 + $0x4] sm:$0xf]
        %v1113 = vld [vmem:[%s1110 + $0x8] sm:$0xf]
        %v1114 = vld [vmem:[%s1110 + $0xc] sm:$0xf]
        %v1115 = vld [vmem:[%s1110 + $0x10] sm:$0xf]
        %v1116 = vld [vmem:[%s1110 + $0x14] sm:$0xf]
        %v1117 = vld [vmem:[%s1110 + $0x18] sm:$0xf]
        %v1118 = vld [vmem:[%s1110 + $0x1c] sm:$0xf]
        %v1119 = vrot.slane %v739, 2
        %v1128 = vunpack.c.l.b16 %v1111
        %v1129 = vunpack.c.l.b16 %v1112
        %v1130 = vunpack.c.l.b16 %v1113
        %v1131 = vunpack.c.l.b16 %v1114
        %v1132 = vunpack.c.l.b16 %v1115
        %v1133 = vunpack.c.l.b16 %v1116
        %v1134 = vunpack.c.l.b16 %v1117
        %v1135 = vunpack.c.l.b16 %v1118
        %v1136 = vpack.c.b16 %v1129, %v1128
        %v1137 = vpack.c.b16 %v1131, %v1130
        %v1138 = vpack.c.b16 %v1133, %v1132
        %v1139 = vpack.c.b16 %v1135, %v1134
        %v1145 = vsel %vm765, %v1119, 0
        %1147 = vmatprep.subr.bf16.mxu0 0
        %1148 = vmatpush1.bf16.msra.mxu0 0
        %1149 = vmatprep.subr.bf16.mxu0 0
        %1150 = vmatpush1.bf16.msra.mxu0 0
        %1151 = vmatprep.subr.bf16.mxu0 0
        %1152 = vmatpush1.bf16.msra.mxu0 0
        %1153 = vmatprep.subr.bf16.mxu0 0
        %1154 = vmatpush1.bf16.msra.mxu0 0
        %1155 = vmatprep.subr.bf16.mxu0 0
        %1156 = vmatpush1.bf16.msra.mxu0 %v1139
        %1157 = vmatprep.subr.bf16.mxu0 0
        %1158 = vmatpush1.bf16.msra.mxu0 %v1138
        %1159 = vmatprep.subr.bf16.mxu0 0
        %1160 = vmatpush1.bf16.msra.mxu0 %v1137
        %1161 = vmatprep.subr.bf16.mxu0 0
        %1162 = vmatpush1.bf16.msra.mxu0 %v1136
        %1163 = vmatprep.subr.bf16.mxu0 0
        %1164 = vmatpush2.bf16.msra.mxu0 0
        %1165 = vmatprep.subr.bf16.mxu0 0
        %1166 = vmatpush2.bf16.msra.mxu0 0
        %1167 = vmatprep.subr.bf16.mxu0 0
        %1168 = vmatpush2.bf16.msra.mxu0 0
        %1169 = vmatprep.subr.bf16.mxu0 0
        %1170 = vmatpush2.bf16.msra.mxu0 0
        %1171 = vmatprep.subr.bf16.mxu0 0
        %1172 = vmatpush2.bf16.msra.mxu0 0
        %1173 = vmatprep.subr.bf16.mxu0 0
        %1174 = vmatpush2.bf16.msra.mxu0 0
        %1175 = vmatprep.subr.bf16.mxu0 0
        %1176 = vmatpush2.bf16.msra.mxu0 0
        %1177 = vmatprep.subr.bf16.mxu0 0
        %1178 = vmatpush2.bf16.msra.mxu0 0
        %1179 = vmatprep.mubr.bf16.mxu0 0
        %1180 = vmatmul.mubr.bf16.gmra.mxu0 %v1145
        %v1181 = vpop.f32.mrf.mxu0
        %v1182 = vadd.f32 0.0, %v1181
        %v1183 = vpop.f32.mrf.mxu0
        %v1184 = vpop.f32.mrf.mxu0
        %v1185 = vpop.f32.mrf.mxu0
        %1186 = vdwg.mxu0
        %v1187 = vadd.f32 %v1109, %v1182
        %s1188 = scalar_lea.vmem [#allocation7], 192
        %v1189 = vld [vmem:[%s1188] sm:$0xf]
        %v1190 = vld [vmem:[%s1188 + $0x4] sm:$0xf]
        %v1191 = vld [vmem:[%s1188 + $0x8] sm:$0xf]
        %v1192 = vld [vmem:[%s1188 + $0xc] sm:$0xf]
        %v1193 = vld [vmem:[%s1188 + $0x10] sm:$0xf]
        %v1194 = vld [vmem:[%s1188 + $0x14] sm:$0xf]
        %v1195 = vld [vmem:[%s1188 + $0x18] sm:$0xf]
        %v1196 = vld [vmem:[%s1188 + $0x1c] sm:$0xf]
        %v1197 = vrot.slane %v720, 3
        %v1206 = vunpack.c.l.b16 %v1189
        %v1207 = vunpack.c.l.b16 %v1190
        %v1208 = vunpack.c.l.b16 %v1191
        %v1209 = vunpack.c.l.b16 %v1192
        %v1210 = vunpack.c.l.b16 %v1193
        %v1211 = vunpack.c.l.b16 %v1194
        %v1212 = vunpack.c.l.b16 %v1195
        %v1213 = vunpack.c.l.b16 %v1196
        %v1214 = vpack.c.b16 %v1207, %v1206
        %v1215 = vpack.c.b16 %v1209, %v1208
        %v1216 = vpack.c.b16 %v1211, %v1210
        %v1217 = vpack.c.b16 %v1213, %v1212
        %v1223 = vsel %vm765, %v1197, 0
        %1225 = vmatprep.subr.bf16.mxu0 0
        %1226 = vmatpush1.bf16.msra.mxu0 0
        %1227 = vmatprep.subr.bf16.mxu0 0
        %1228 = vmatpush1.bf16.msra.mxu0 0
        %1229 = vmatprep.subr.bf16.mxu0 0
        %1230 = vmatpush1.bf16.msra.mxu0 0
        %1231 = vmatprep.subr.bf16.mxu0 0
        %1232 = vmatpush1.bf16.msra.mxu0 0
        %1233 = vmatprep.subr.bf16.mxu0 0
        %1234 = vmatpush1.bf16.msra.mxu0 %v1217
        %1235 = vmatprep.subr.bf16.mxu0 0
        %1236 = vmatpush1.bf16.msra.mxu0 %v1216
        %1237 = vmatprep.subr.bf16.mxu0 0
        %1238 = vmatpush1.bf16.msra.mxu0 %v1215
        %1239 = vmatprep.subr.bf16.mxu0 0
        %1240 = vmatpush1.bf16.msra.mxu0 %v1214
        %1241 = vmatprep.subr.bf16.mxu0 0
        %1242 = vmatpush2.bf16.msra.mxu0 0
        %1243 = vmatprep.subr.bf16.mxu0 0
        %1244 = vmatpush2.bf16.msra.mxu0 0
        %1245 = vmatprep.subr.bf16.mxu0 0
        %1246 = vmatpush2.bf16.msra.mxu0 0
        %1247 = vmatprep.subr.bf16.mxu0 0
        %1248 = vmatpush2.bf16.msra.mxu0 0
        %1249 = vmatprep.subr.bf16.mxu0 0
        %1250 = vmatpush2.bf16.msra.mxu0 0
        %1251 = vmatprep.subr.bf16.mxu0 0
        %1252 = vmatpush2.bf16.msra.mxu0 0
        %1253 = vmatprep.subr.bf16.mxu0 0
        %1254 = vmatpush2.bf16.msra.mxu0 0
        %1255 = vmatprep.subr.bf16.mxu0 0
        %1256 = vmatpush2.bf16.msra.mxu0 0
        %1257 = vmatprep.mubr.bf16.mxu0 0
        %1258 = vmatmul.mubr.bf16.gmra.mxu0 %v1223
        %v1259 = vpop.f32.mrf.mxu0
        %v1260 = vadd.f32 0.0, %v1259
        %v1261 = vpop.f32.mrf.mxu0
        %v1262 = vpop.f32.mrf.mxu0
        %v1263 = vpop.f32.mrf.mxu0
        %1264 = vdwg.mxu0
        %v1265 = vadd.f32 %v1187, %v1260
        %s1266 = scalar_lea.vmem [#allocation7], 224
        %v1267 = vld [vmem:[%s1266] sm:$0xf]
        %v1268 = vld [vmem:[%s1266 + $0x4] sm:$0xf]
        %v1269 = vld [vmem:[%s1266 + $0x8] sm:$0xf]
        %v1270 = vld [vmem:[%s1266 + $0xc] sm:$0xf]
        %v1271 = vld [vmem:[%s1266 + $0x10] sm:$0xf]
        %v1272 = vld [vmem:[%s1266 + $0x14] sm:$0xf]
        %v1273 = vld [vmem:[%s1266 + $0x18] sm:$0xf]
        %v1274 = vld [vmem:[%s1266 + $0x1c] sm:$0xf]
        %v1275 = vrot.slane %v739, 3
        %v1284 = vunpack.c.l.b16 %v1267
        %v1285 = vunpack.c.l.b16 %v1268
        %v1286 = vunpack.c.l.b16 %v1269
        %v1287 = vunpack.c.l.b16 %v1270
        %v1288 = vunpack.c.l.b16 %v1271
        %v1289 = vunpack.c.l.b16 %v1272
        %v1290 = vunpack.c.l.b16 %v1273
        %v1291 = vunpack.c.l.b16 %v1274
        %v1292 = vpack.c.b16 %v1285, %v1284
        %v1293 = vpack.c.b16 %v1287, %v1286
        %v1294 = vpack.c.b16 %v1289, %v1288
        %v1295 = vpack.c.b16 %v1291, %v1290
        %v1301 = vsel %vm765, %v1275, 0
        %1303 = vmatprep.subr.bf16.mxu0 0
        %1304 = vmatpush1.bf16.msra.mxu0 0
        %1305 = vmatprep.subr.bf16.mxu0 0
        %1306 = vmatpush1.bf16.msra.mxu0 0
        %1307 = vmatprep.subr.bf16.mxu0 0
        %1308 = vmatpush1.bf16.msra.mxu0 0
        %1309 = vmatprep.subr.bf16.mxu0 0
        %1310 = vmatpush1.bf16.msra.mxu0 0
        %1311 = vmatprep.subr.bf16.mxu0 0
        %1312 = vmatpush1.bf16.msra.mxu0 %v1295
        %1313 = vmatprep.subr.bf16.mxu0 0
        %1314 = vmatpush1.bf16.msra.mxu0 %v1294
        %1315 = vmatprep.subr.bf16.mxu0 0
        %1316 = vmatpush1.bf16.msra.mxu0 %v1293
        %1317 = vmatprep.subr.bf16.mxu0 0
        %1318 = vmatpush1.bf16.msra.mxu0 %v1292
        %1319 = vmatprep.subr.bf16.mxu0 0
        %1320 = vmatpush2.bf16.msra.mxu0 0
        %1321 = vmatprep.subr.bf16.mxu0 0
        %1322 = vmatpush2.bf16.msra.mxu0 0
        %1323 = vmatprep.subr.bf16.mxu0 0
        %1324 = vmatpush2.bf16.msra.mxu0 0
        %1325 = vmatprep.subr.bf16.mxu0 0
        %1326 = vmatpush2.bf16.msra.mxu0 0
        %1327 = vmatprep.subr.bf16.mxu0 0
        %1328 = vmatpush2.bf16.msra.mxu0 0
        %1329 = vmatprep.subr.bf16.mxu0 0
        %1330 = vmatpush2.bf16.msra.mxu0 0
        %1331 = vmatprep.subr.bf16.mxu0 0
        %1332 = vmatpush2.bf16.msra.mxu0 0
        %1333 = vmatprep.subr.bf16.mxu0 0
        %1334 = vmatpush2.bf16.msra.mxu0 0
        %1335 = vmatprep.mubr.bf16.mxu0 0
        %1336 = vmatmul.mubr.bf16.gmra.mxu0 %v1301
        %v1337 = vpop.f32.mrf.mxu0
        %v1338 = vadd.f32 0.0, %v1337
        %v1339 = vpop.f32.mrf.mxu0
        %v1340 = vpop.f32.mrf.mxu0
        %v1341 = vpop.f32.mrf.mxu0
        %1342 = vdwg.mxu0
        %v1343 = vadd.f32 %v1265, %v1338
        %v1344 = vld [vmem:[%s4] sm:$0x1]
        %v1345 = vadd.f32 %v1343, %v1344
        %1346 = vst [vmem:[%s270] sm:$0x1] %v1345
        %s1347 = sand.u32 %s141, 1
        %s1348 = scalar_lea.sflag [#allocation4], %s1347
        %s1349 = sand.u32 %s141, 1
        %s1350 = scalar_lea.vmem [#allocation8], %s1349
        // Predicated region
        $region53: #{tpu_custom_call.1} parent=39 // pred_check
          %p1351 = pneg %p151
        $region54: #{tpu_custom_call.1} parent=39 // pred_check_branch
          %1353 = sbr.rel (%p1351) target = $region56
        $region55: #{tpu_custom_call.1} parent=39 // pred_region
          %s1355 = ssub.s32 16, 16
          %1356 = vsyncadd %s1348, %s1355
          %s1357 = smul.addr %s23, 16
          %s1358 = scalar_lea.hbm %s5, %s1357
          %s1360 = sshll.u32 %s1350, 4
          %s1361 = int_to_ptr.vmem [resolvable:$true] %s1360
          %1363 = dma.vmem_to_hbm [thread:$0]  %s1361, 16, %s1358, %s1348
        $region56: #{tpu_custom_call.1} parent=39 // pred_fallthru
          _
      $region40: #{tpu_custom_call.1} parent=5 // pred_fallthru
        _
      %p1364 = scmp.le.s32.totalorder 2, %s18
      // Predicated region
      $region57: #{tpu_custom_call.1} parent=5 // pred_check
        %p1365 = pneg %p1364
      $region58: #{tpu_custom_call.1} parent=5 // pred_check_branch
        %1367 = sbr.rel (%p1365) target = $region60
      $region59: #{tpu_custom_call.1} parent=5 // pred_region
        %s1368 = ssub.s32 %s18, 2
        // Predicated region
        $region61: #{tpu_custom_call.1} parent=59 // pred_check
          %p1369 = pneg %p157
        $region62: #{tpu_custom_call.1} parent=59 // pred_check_branch
          %1371 = sbr.rel (%p1369) target = $region64
        $region63: #{tpu_custom_call.1} parent=59 // pred_region
          %s1372 = sand.u32 %s142, 1
          %s1373 = scalar_lea.sflag [#allocation4], %s1372
          %s1374 = sand.u32 %s142, 1
          %s1375 = scalar_lea.vmem [#allocation8], %s1374
          %1376 = dma.done %s1373, 16
        $region64: #{tpu_custom_call.1} parent=59 // pred_fallthru
          _
      $region60: #{tpu_custom_call.1} parent=5 // pred_fallthru
        _
    $region6: #{tpu_custom_call.1} parent=1 // loop_footer
      %s22 = sadd.s32 1, %s18
    $region7: #{tpu_custom_call.1} parent=1 // loop_footer_branch
      %17 = sbr.rel target = $region3
    $region8: #{tpu_custom_call.1} parent=1 // loop_exit
      _
    %1377 = vsyncpa [#allocation3], 1
    %s1378 = scalar_lea.sflag [#allocation3], 1
    %1379 = vsyncpa %s1378, 1
    %1380 = vsyncpa [#allocation6], 1
    %1381 = vsyncpa [#allocation4], 1
    %s1382 = scalar_lea.sflag [#allocation4], 1
    %1383 = vsyncpa %s1382, 1

</llo_original>
